<compile_context>
chip_gen: v6e
topology: v6e:2x2x1
jax: 0.10.0
libtpu: 0.0.40
codegen_flags: <defaults>
</compile_context>

<pallas_src>
import jax
import jax.numpy as jnp
from jax import lax
from jax.experimental import pallas as pl
from jax.experimental.pallas import tpu as pltpu


def _sigmoid(x):
    # tanh form: one EUP op + two VPU ops; no f32 divide on the serial critical path.
    return 0.5 * jnp.tanh(0.5 * x) + 0.5


def _round_up(x, m):
    return ((x + m - 1) // m) * m


# ---------------------------------------------------------------------------
# Fused kernel: input projection + GRU recurrence + masked output + mean pooling.
# ---------------------------------------------------------------------------
def gru_kernel(lens_ref, x_ref, wih_ref, whh_ref, bih_ref, bhh_ref,
               out_ref, fc_ref, h_sc, acc_sc):
    # lens_ref: (bt, 1)      int32  valid length per batch row
    # x_ref:    (tc, bt, Dp) bf16   time-major input chunk (feature dim padded to 128)
    # wih_ref:  (Dp, 3H)     bf16   input weights (transposed, zero-padded rows)
    # whh_ref:  (H, 3H)      bf16   recurrent weights (transposed)
    # bih_ref:  (1, 3H)      f32
    # bhh_ref:  (1, 3H)      f32
    # out_ref:  (tc, bt, H)         GRU outputs, zeroed past each sequence end
    # fc_ref:   (bt, H)      f32    mean over valid timesteps (written on last chunk)
    # h_sc/acc_sc: (bt, H)   f32    hidden state / pooling accumulator, carried
    #                               across time chunks in VMEM scratch
    j = pl.program_id(1)
    n_chunks = pl.num_programs(1)
    tc = x_ref.shape[0]
    H = whh_ref.shape[0]

    @pl.when(j == 0)
    def _():
        h_sc[...] = jnp.zeros_like(h_sc)
        acc_sc[...] = jnp.zeros_like(acc_sc)

    lens_i = lens_ref[...]                      # (bt, 1) int32
    t_base = j * tc                             # global time offset of this chunk
    wih = wih_ref[...]
    whh = whh_ref[...]
    bih = bih_ref[...]
    bhh = bhh_ref[...]

    def step(t, carry):
        h, acc = carry                          # (bt, H) f32 each
        # Input projection: independent of h, overlaps the recurrent chain.
        gx = jnp.dot(x_ref[t], wih, preferred_element_type=jnp.float32) + bih
        # NOTE: h is cast to bf16 for the MXU (matches the reference path); the
        # rounding compounds over very long T relative to PyTorch's f32 GRU.
        gh = jnp.dot(h.astype(jnp.bfloat16), whh,
                     preferred_element_type=jnp.float32) + bhh
        r = _sigmoid(gx[:, 0:H] + gh[:, 0:H])
        z = _sigmoid(gx[:, H:2 * H] + gh[:, H:2 * H])
        n = jnp.tanh(gx[:, 2 * H:] + r * gh[:, 2 * H:])
        h_new = (1.0 - z) * n + z * h
        valid = (t_base + t) < lens_i           # (bt, 1) bool, scalar-vs-vector cmp
        out_t = jnp.where(valid, h_new, 0.0)    # zero at padded timesteps
        out_ref[t] = out_t.astype(out_ref.dtype)
        return h_new, acc + out_t

    h, acc = lax.fori_loop(0, tc, step, (h_sc[...], acc_sc[...]),
                           unroll=(True if tc <= 32 else 2))
    h_sc[...] = h
    acc_sc[...] = acc

    @pl.when(j == n_chunks - 1)
    def _():
        # Fused mean pooling: one approx reciprocal (EUP slot) + one multiply.
        # lens == 0 would give inf here (same hazard as the PyTorch path).
        inv_len = pl.reciprocal(lens_i.astype(jnp.float32), approx=True)
        fc_ref[...] = acc * inv_len


def rnn_encoder_forward(x, lens, w_ih, w_hh, b_ih, b_hh, *,
                        batch_tile=64, time_chunk=64, out_dtype=jnp.bfloat16):
    """RnnEncoder.forward (default GRU config, pooling='mean').

    x: (B, T, D_attn) f32; lens: (B,) int.
    Weights in PyTorch GRU layout: w_ih (3H, D_attn), w_hh (3H, H),
    b_ih (3H,), b_hh (3H,), gate order [r | z | n].  H must be a multiple of 128.
    Returns (attn_emb (B, T, H), fc_emb (B, H), attn_emb_len (B,)).
    """
    B, T, D = x.shape
    H = w_hh.shape[1]
    assert H % 128 == 0, "hidden_size must be a multiple of 128 (pad otherwise)"
    lens = jnp.asarray(lens, jnp.int32)

    # Batch tiling: big tiles feed the MXU M dimension; when one tile would cover
    # the whole (large-enough) batch, split into two so the "parallel" batch axis
    # can shard across v7x's two TensorCores (cheap on single-TC chips too).
    bt = min(_round_up(B, 8), batch_tile)
    if _round_up(B, 8) <= bt and B >= 16:
        bt = _round_up(_round_up(B, 8) // 2, 8)
    Bp = _round_up(B, bt)

    # Time chunking keeps per-step VMEM bounded for long audio sequences.
    tc = min(_round_up(T, 8), time_chunk)
    Tp = _round_up(T, tc)

    # Lane-dense feature dim: pad D up to a multiple of 128 with zeros (bf16).
    Dp = _round_up(D, 128)

    # Padded batch rows get length 1 (avoids 1/0; their rows are sliced off below).
    lens_p = jnp.pad(lens, (0, Bp - B), constant_values=1).reshape(Bp, 1)

    # Time-major, zero-padded, bf16 input (input transpose is the small tensor).
    xt = jnp.transpose(x, (1, 0, 2))
    xt = jnp.pad(xt, ((0, Tp - T), (0, Bp - B), (0, Dp - D))).astype(jnp.bfloat16)

    # bf16 MXU operands with f32 accumulation; biases stay f32.
    wih_t = jnp.pad(jnp.transpose(w_ih), ((0, Dp - D), (0, 0))).astype(jnp.bfloat16)
    whh_t = jnp.transpose(w_hh).astype(jnp.bfloat16)
    bih2 = b_ih.reshape(1, 3 * H).astype(jnp.float32)
    bhh2 = b_hh.reshape(1, 3 * H).astype(jnp.float32)

    out_tm, fc = pl.pallas_call(
        gru_kernel,
        out_shape=(jax.ShapeDtypeStruct((Tp, Bp, H), out_dtype),
                   jax.ShapeDtypeStruct((Bp, H), jnp.float32)),
        grid_spec=pltpu.PrefetchScalarGridSpec(
            num_scalar_prefetch=0,
            grid=(Bp // bt, Tp // tc),
            in_specs=[
                pl.BlockSpec((bt, 1), lambda i, j: (i, 0)),
                pl.BlockSpec((tc, bt, Dp), lambda i, j: (j, i, 0)),
                pl.BlockSpec((Dp, 3 * H), lambda i, j: (0, 0)),
                pl.BlockSpec((H, 3 * H), lambda i, j: (0, 0)),
                pl.BlockSpec((1, 3 * H), lambda i, j: (0, 0)),
                pl.BlockSpec((1, 3 * H), lambda i, j: (0, 0)),
            ],
            out_specs=(pl.BlockSpec((tc, bt, H), lambda i, j: (j, i, 0)),
                       pl.BlockSpec((bt, H), lambda i, j: (i, 0))),
            scratch_shapes=[pltpu.VMEM((bt, H), jnp.float32),
                            pltpu.VMEM((bt, H), jnp.float32)],
        ),
        compiler_params=pltpu.CompilerParams(
            dimension_semantics=("parallel", "arbitrary"),
            vmem_limit_bytes=32 * 1024 * 1024),
    )(lens_p, xt, wih_t, whh_t, bih2, bhh2)

    # TODO(synk): downstream consumers that accept time-major (T, B, H) could take
    # out_tm directly and skip this transpose (saves one HBM read+write of attn_emb).
    attn_emb = jnp.transpose(out_tm, (1, 0, 2))[:B, :T]
    fc_emb = fc[:B]
    return attn_emb, fc_emb, lens


def rnn_encoder_ref(x, lens, w_ih, w_hh, b_ih, b_hh):
    """Pure-JAX reference of the PyTorch forward (GRU + length-masked mean pooling).
    Matmul operands are cast to bf16 with f32 accumulation to mirror the kernel's
    MXU path, so the comparison is apples-to-apples."""
    B, T, D = x.shape
    H = w_hh.shape[1]
    wih_t = jnp.transpose(w_ih).astype(jnp.bfloat16)
    whh_t = jnp.transpose(w_hh).astype(jnp.bfloat16)

    def cell(h, x_t):
        gx = jnp.dot(x_t.astype(jnp.bfloat16), wih_t,
                     preferred_element_type=jnp.float32) + b_ih
        gh = jnp.dot(h.astype(jnp.bfloat16), whh_t,
                     preferred_element_type=jnp.float32) + b_hh
        r = _sigmoid(gx[:, 0:H] + gh[:, 0:H])
        z = _sigmoid(gx[:, H:2 * H] + gh[:, H:2 * H])
        n = jnp.tanh(gx[:, 2 * H:] + r * gh[:, 2 * H:])
        h_new = (1.0 - z) * n + z * h
        return h_new, h_new

    h0 = jnp.zeros((B, H), jnp.float32)
    _, outs = jax.lax.scan(cell, h0, jnp.swapaxes(x, 0, 1))    # (T, B, H)
    outs = jnp.swapaxes(outs, 0, 1)                            # (B, T, H)
    mask = (jnp.arange(T)[None, :] < lens[:, None]).astype(jnp.float32)[:, :, None]
    attn_emb = outs * mask
    fc_emb = attn_emb.sum(axis=1) / lens[:, None].astype(jnp.float32)
    return attn_emb, fc_emb


if __name__ == "__main__":
    # Small shapes consistent with the module: batch=2, seq=8, attn_feat_dim=64,
    # hidden_size=128 (kwargs-overridable; a multiple of 128 keeps lanes dense).
    B, T, D_attn, H = 2, 8, 64, 128

    key = jax.random.PRNGKey(0)
    kx, kih, khh, kbih, kbhh = jax.random.split(key, 5)

    x = jax.random.normal(kx, (B, T, D_attn), dtype=jnp.float32)
    lens = jnp.array([T, 5], dtype=jnp.int32)              # ragged valid lengths

    bound = 1.0 / (H ** 0.5)                               # nn.GRU default init bound
    w_ih = jax.random.uniform(kih, (3 * H, D_attn), minval=-bound, maxval=bound,
                              dtype=jnp.float32)
    w_hh = jax.random.uniform(khh, (3 * H, H), minval=-bound, maxval=bound,
                              dtype=jnp.float32)
    b_ih = jax.random.uniform(kbih, (3 * H,), minval=-bound, maxval=bound,
                              dtype=jnp.float32)
    b_hh = jax.random.uniform(kbhh, (3 * H,), minval=-bound, maxval=bound,
                              dtype=jnp.float32)

    attn_emb, fc_emb, attn_emb_len = rnn_encoder_forward(
        x, lens, w_ih, w_hh, b_ih, b_hh)
    jax.block_until_ready((attn_emb, fc_emb))

    attn_ref, fc_ref = rnn_encoder_ref(x, lens, w_ih, w_hh, b_ih, b_hh)
    assert attn_emb.shape == (B, T, H)
    assert fc_emb.shape == (B, H)
    assert attn_emb_len.shape == (B,)
    # attn_emb is stored in bf16 (perf feedback): compare against the bf16-rounded
    # reference; fc_emb stays f32 (approx reciprocal adds ~2^-12 relative error).
    attn_ref_bf = attn_ref.astype(jnp.bfloat16).astype(jnp.float32)
    assert jnp.allclose(attn_emb.astype(jnp.float32), attn_ref_bf,
                        atol=5e-3, rtol=5e-3)
    assert jnp.allclose(fc_emb, fc_ref, atol=5e-3, rtol=5e-3)

    print("KERNEL_OK")
</pallas_src>

<mosaic_0001>
module attributes {stable_mosaic.version = 11 : i64} {
  func.func @gru_kernel(%arg0: i32, %arg1: i32, %arg2: memref<8x1xi32, #tpu.memory_space<vmem>>, %arg3: memref<8x8x128xbf16, #tpu.memory_space<vmem>>, %arg4: memref<128x384xbf16, #tpu.memory_space<vmem>>, %arg5: memref<128x384xbf16, #tpu.memory_space<vmem>>, %arg6: memref<1x384xf32, #tpu.memory_space<vmem>>, %arg7: memref<1x384xf32, #tpu.memory_space<vmem>>, %arg8: memref<8x8x128xbf16, #tpu.memory_space<vmem>>, %arg9: memref<8x128xf32, #tpu.memory_space<vmem>>, %arg10: memref<8x128xf32, #tpu.memory_space<vmem>>, %arg11: memref<8x128xf32, #tpu.memory_space<vmem>>) attributes {dimension_semantics = [#tpu.dimension_semantics<parallel>, #tpu.dimension_semantics<arbitrary>], iteration_bounds = array<i64: 1, 1>, scalar_prefetch = 0 : i64, scratch_operands = 2 : i64, tpu.core_type = #tpu.core_type<tc>, window_params = [{transform_indices = @transform_0, window_bounds = array<i64: 8, 1>}, {transform_indices = @transform_1, window_bounds = array<i64: 8, 8, 128>}, {pipeline_mode = #tpu.pipeline_mode<synchronous>, transform_indices = @transform_2, window_bounds = array<i64: 128, 384>}, {pipeline_mode = #tpu.pipeline_mode<synchronous>, transform_indices = @transform_3, window_bounds = array<i64: 128, 384>}, {pipeline_mode = #tpu.pipeline_mode<synchronous>, transform_indices = @transform_4, window_bounds = array<i64: 1, 384>}, {pipeline_mode = #tpu.pipeline_mode<synchronous>, transform_indices = @transform_5, window_bounds = array<i64: 1, 384>}, {transform_indices = @transform_6, window_bounds = array<i64: 8, 8, 128>}, {transform_indices = @transform_7, window_bounds = array<i64: 8, 128>}]} {
    %c0_i32 = arith.constant 0 : i32
    %0 = arith.cmpi eq, %arg1, %c0_i32 : i32
    %1 = arith.extui %0 : i1 to i32
    %c0_i32_0 = arith.constant 0 : i32
    %2 = arith.cmpi ne, %1, %c0_i32_0 : i32
    scf.if %2 {
      %cst_133 = arith.constant 0.000000e+00 : f32
      %440 = vector.broadcast %cst_133 : f32 to vector<8x128xf32>
      %c0_134 = arith.constant 0 : index
      %c0_135 = arith.constant 0 : index
      %441 = vector.load %arg10[%c0_134, %c0_135] : memref<8x128xf32, #tpu.memory_space<vmem>>, vector<8x128xf32>
      tpu.vector_store %arg10[%c0_134, %c0_135], %440 {strides = array<i32>} : memref<8x128xf32, #tpu.memory_space<vmem>>, vector<8x128xf32>,
      %cst_136 = arith.constant 0.000000e+00 : f32
      %442 = vector.broadcast %cst_136 : f32 to vector<8x128xf32>
      %c0_137 = arith.constant 0 : index
      %c0_138 = arith.constant 0 : index
      %443 = vector.load %arg11[%c0_137, %c0_138] : memref<8x128xf32, #tpu.memory_space<vmem>>, vector<8x128xf32>
      tpu.vector_store %arg11[%c0_137, %c0_138], %442 {strides = array<i32>} : memref<8x128xf32, #tpu.memory_space<vmem>>, vector<8x128xf32>,
    } else {
    }
    %c0 = arith.constant 0 : index
    %c0_1 = arith.constant 0 : index
    %3 = vector.load %arg2[%c0, %c0_1] : memref<8x1xi32, #tpu.memory_space<vmem>>, vector<8x1xi32>
    %c8_i32 = arith.constant 8 : i32
    %4 = arith.muli %arg1, %c8_i32 : i32
    %c0_2 = arith.constant 0 : index
    %c0_3 = arith.constant 0 : index
    %5 = vector.load %arg4[%c0_2, %c0_3] : memref<128x384xbf16, #tpu.memory_space<vmem>>, vector<128x384xbf16>
    %c0_4 = arith.constant 0 : index
    %c0_5 = arith.constant 0 : index
    %6 = vector.load %arg5[%c0_4, %c0_5] : memref<128x384xbf16, #tpu.memory_space<vmem>>, vector<128x384xbf16>
    %c0_6 = arith.constant 0 : index
    %c0_7 = arith.constant 0 : index
    %7 = vector.load %arg6[%c0_6, %c0_7] : memref<1x384xf32, #tpu.memory_space<vmem>>, vector<1x384xf32>
    %c0_8 = arith.constant 0 : index
    %c0_9 = arith.constant 0 : index
    %8 = vector.load %arg7[%c0_8, %c0_9] : memref<1x384xf32, #tpu.memory_space<vmem>>, vector<1x384xf32>
    %c0_10 = arith.constant 0 : index
    %c0_11 = arith.constant 0 : index
    %9 = vector.load %arg10[%c0_10, %c0_11] : memref<8x128xf32, #tpu.memory_space<vmem>>, vector<8x128xf32>
    %c0_12 = arith.constant 0 : index
    %c0_13 = arith.constant 0 : index
    %10 = vector.load %arg11[%c0_12, %c0_13] : memref<8x128xf32, #tpu.memory_space<vmem>>, vector<8x128xf32>
    %c0_i32_14 = arith.constant 0 : i32
    %11 = arith.index_cast %c0_i32_14 : i32 to index
    %c0_15 = arith.constant 0 : index
    %c0_16 = arith.constant 0 : index
    %12 = vector.load %arg3[%11, %c0_15, %c0_16] : memref<8x8x128xbf16, #tpu.memory_space<vmem>>, vector<1x8x128xbf16>
    %13 = vector.shape_cast %12 : vector<1x8x128xbf16> to vector<8x128xbf16>
    %cst = arith.constant dense<0.000000e+00> : vector<8x384xf32>
    %14 = tpu.matmul %13, %5, %cst {dimension_numbers = #tpu.dot_dimension_numbers<[1], [0], [0], [1], [0, 0, 1, 1], [], []>} : vector<8x128xbf16>, vector<128x384xbf16>, vector<8x384xf32> -> vector<8x384xf32>
    %15 = vector.broadcast %7 : vector<1x384xf32> to vector<8x384xf32>
    %16 = arith.addf %14, %15 : vector<8x384xf32>
    %17 = arith.truncf %9 : vector<8x128xf32> to vector<8x128xbf16>
    %cst_17 = arith.constant dense<0.000000e+00> : vector<8x384xf32>
    %18 = tpu.matmul %17, %6, %cst_17 {dimension_numbers = #tpu.dot_dimension_numbers<[1], [0], [0], [1], [0, 0, 1, 1], [], []>} : vector<8x128xbf16>, vector<128x384xbf16>, vector<8x384xf32> -> vector<8x384xf32>
    %19 = vector.broadcast %8 : vector<1x384xf32> to vector<8x384xf32>
    %20 = arith.addf %18, %19 : vector<8x384xf32>
    %21 = vector.extract_strided_slice %16 {offsets = [0, 0], sizes = [8, 128], strides = [1, 1]} : vector<8x384xf32> to vector<8x128xf32>
    %22 = vector.extract_strided_slice %20 {offsets = [0, 0], sizes = [8, 128], strides = [1, 1]} : vector<8x384xf32> to vector<8x128xf32>
    %23 = arith.addf %21, %22 : vector<8x128xf32>
    %cst_18 = arith.constant 5.000000e-01 : f32
    %24 = vector.broadcast %cst_18 : f32 to vector<8x128xf32>
    %25 = arith.mulf %24, %23 : vector<8x128xf32>
    %26 = math.tanh %25 : vector<8x128xf32>
    %cst_19 = arith.constant 5.000000e-01 : f32
    %27 = vector.broadcast %cst_19 : f32 to vector<8x128xf32>
    %28 = arith.mulf %27, %26 : vector<8x128xf32>
    %cst_20 = arith.constant 5.000000e-01 : f32
    %29 = vector.broadcast %cst_20 : f32 to vector<8x128xf32>
    %30 = arith.addf %28, %29 : vector<8x128xf32>
    %31 = vector.extract_strided_slice %16 {offsets = [0, 128], sizes = [8, 128], strides = [1, 1]} : vector<8x384xf32> to vector<8x128xf32>
    %32 = vector.extract_strided_slice %20 {offsets = [0, 128], sizes = [8, 128], strides = [1, 1]} : vector<8x384xf32> to vector<8x128xf32>
    %33 = arith.addf %31, %32 : vector<8x128xf32>
    %cst_21 = arith.constant 5.000000e-01 : f32
    %34 = vector.broadcast %cst_21 : f32 to vector<8x128xf32>
    %35 = arith.mulf %34, %33 : vector<8x128xf32>
    %36 = math.tanh %35 : vector<8x128xf32>
    %cst_22 = arith.constant 5.000000e-01 : f32
    %37 = vector.broadcast %cst_22 : f32 to vector<8x128xf32>
    %38 = arith.mulf %37, %36 : vector<8x128xf32>
    %cst_23 = arith.constant 5.000000e-01 : f32
    %39 = vector.broadcast %cst_23 : f32 to vector<8x128xf32>
    %40 = arith.addf %38, %39 : vector<8x128xf32>
    %41 = vector.extract_strided_slice %16 {offsets = [0, 256], sizes = [8, 128], strides = [1, 1]} : vector<8x384xf32> to vector<8x128xf32>
    %42 = vector.extract_strided_slice %20 {offsets = [0, 256], sizes = [8, 128], strides = [1, 1]} : vector<8x384xf32> to vector<8x128xf32>
    %43 = arith.mulf %30, %42 : vector<8x128xf32>
    %44 = arith.addf %41, %43 : vector<8x128xf32>
    %45 = math.tanh %44 : vector<8x128xf32>
    %cst_24 = arith.constant 1.000000e+00 : f32
    %46 = vector.broadcast %cst_24 : f32 to vector<8x128xf32>
    %47 = arith.subf %46, %40 : vector<8x128xf32>
    %48 = arith.mulf %47, %45 : vector<8x128xf32>
    %49 = arith.mulf %40, %9 : vector<8x128xf32>
    %50 = arith.addf %48, %49 : vector<8x128xf32>
    %51 = arith.addi %4, %c0_i32_14 : i32
    %52 = vector.broadcast %51 : i32 to vector<8x1xi32>
    %53 = arith.cmpi slt, %52, %3 : vector<8x1xi32>
    %cst_25 = arith.constant 0.000000e+00 : f32
    %54 = vector.shape_cast %53 : vector<8x1xi1> to vector<8x1xi1>
    %55 = vector.broadcast %54 : vector<8x1xi1> to vector<8x128xi1>
    %56 = vector.broadcast %cst_25 : f32 to vector<8x128xf32>
    %57 = arith.select %55, %50, %56 : vector<8x128xi1>, vector<8x128xf32>
    %58 = arith.truncf %57 : vector<8x128xf32> to vector<8x128xbf16>
    %59 = arith.index_cast %c0_i32_14 : i32 to index
    %c0_26 = arith.constant 0 : index
    %c0_27 = arith.constant 0 : index
    %60 = vector.load %arg8[%59, %c0_26, %c0_27] : memref<8x8x128xbf16, #tpu.memory_space<vmem>>, vector<1x8x128xbf16>
    %61 = vector.shape_cast %60 : vector<1x8x128xbf16> to vector<8x128xbf16>
    %62 = vector.shape_cast %58 : vector<8x128xbf16> to vector<1x8x128xbf16>
    tpu.vector_store %arg8[%59, %c0_26, %c0_27], %62 {strides = array<i32>} : memref<8x8x128xbf16, #tpu.memory_space<vmem>>, vector<1x8x128xbf16>,
    %63 = arith.addf %10, %57 : vector<8x128xf32>
    %c1_i32 = arith.constant 1 : i32
    %64 = arith.index_cast %c1_i32 : i32 to index
    %c0_28 = arith.constant 0 : index
    %c0_29 = arith.constant 0 : index
    %65 = vector.load %arg3[%64, %c0_28, %c0_29] : memref<8x8x128xbf16, #tpu.memory_space<vmem>>, vector<1x8x128xbf16>
    %66 = vector.shape_cast %65 : vector<1x8x128xbf16> to vector<8x128xbf16>
    %cst_30 = arith.constant dense<0.000000e+00> : vector<8x384xf32>
    %67 = tpu.matmul %66, %5, %cst_30 {dimension_numbers = #tpu.dot_dimension_numbers<[1], [0], [0], [1], [0, 0, 1, 1], [], []>} : vector<8x128xbf16>, vector<128x384xbf16>, vector<8x384xf32> -> vector<8x384xf32>
    %68 = vector.broadcast %7 : vector<1x384xf32> to vector<8x384xf32>
    %69 = arith.addf %67, %68 : vector<8x384xf32>
    %70 = arith.truncf %50 : vector<8x128xf32> to vector<8x128xbf16>
    %cst_31 = arith.constant dense<0.000000e+00> : vector<8x384xf32>
    %71 = tpu.matmul %70, %6, %cst_31 {dimension_numbers = #tpu.dot_dimension_numbers<[1], [0], [0], [1], [0, 0, 1, 1], [], []>} : vector<8x128xbf16>, vector<128x384xbf16>, vector<8x384xf32> -> vector<8x384xf32>
    %72 = vector.broadcast %8 : vector<1x384xf32> to vector<8x384xf32>
    %73 = arith.addf %71, %72 : vector<8x384xf32>
    %74 = vector.extract_strided_slice %69 {offsets = [0, 0], sizes = [8, 128], strides = [1, 1]} : vector<8x384xf32> to vector<8x128xf32>
    %75 = vector.extract_strided_slice %73 {offsets = [0, 0], sizes = [8, 128], strides = [1, 1]} : vector<8x384xf32> to vector<8x128xf32>
    %76 = arith.addf %74, %75 : vector<8x128xf32>
    %cst_32 = arith.constant 5.000000e-01 : f32
    %77 = vector.broadcast %cst_32 : f32 to vector<8x128xf32>
    %78 = arith.mulf %77, %76 : vector<8x128xf32>
    %79 = math.tanh %78 : vector<8x128xf32>
    %cst_33 = arith.constant 5.000000e-01 : f32
    %80 = vector.broadcast %cst_33 : f32 to vector<8x128xf32>
    %81 = arith.mulf %80, %79 : vector<8x128xf32>
    %cst_34 = arith.constant 5.000000e-01 : f32
    %82 = vector.broadcast %cst_34 : f32 to vector<8x128xf32>
    %83 = arith.addf %81, %82 : vector<8x128xf32>
    %84 = vector.extract_strided_slice %69 {offsets = [0, 128], sizes = [8, 128], strides = [1, 1]} : vector<8x384xf32> to vector<8x128xf32>
    %85 = vector.extract_strided_slice %73 {offsets = [0, 128], sizes = [8, 128], strides = [1, 1]} : vector<8x384xf32> to vector<8x128xf32>
    %86 = arith.addf %84, %85 : vector<8x128xf32>
    %cst_35 = arith.constant 5.000000e-01 : f32
    %87 = vector.broadcast %cst_35 : f32 to vector<8x128xf32>
    %88 = arith.mulf %87, %86 : vector<8x128xf32>
    %89 = math.tanh %88 : vector<8x128xf32>
    %cst_36 = arith.constant 5.000000e-01 : f32
    %90 = vector.broadcast %cst_36 : f32 to vector<8x128xf32>
    %91 = arith.mulf %90, %89 : vector<8x128xf32>
    %cst_37 = arith.constant 5.000000e-01 : f32
    %92 = vector.broadcast %cst_37 : f32 to vector<8x128xf32>
    %93 = arith.addf %91, %92 : vector<8x128xf32>
    %94 = vector.extract_strided_slice %69 {offsets = [0, 256], sizes = [8, 128], strides = [1, 1]} : vector<8x384xf32> to vector<8x128xf32>
    %95 = vector.extract_strided_slice %73 {offsets = [0, 256], sizes = [8, 128], strides = [1, 1]} : vector<8x384xf32> to vector<8x128xf32>
    %96 = arith.mulf %83, %95 : vector<8x128xf32>
    %97 = arith.addf %94, %96 : vector<8x128xf32>
    %98 = math.tanh %97 : vector<8x128xf32>
    %cst_38 = arith.constant 1.000000e+00 : f32
    %99 = vector.broadcast %cst_38 : f32 to vector<8x128xf32>
    %100 = arith.subf %99, %93 : vector<8x128xf32>
    %101 = arith.mulf %100, %98 : vector<8x128xf32>
    %102 = arith.mulf %93, %50 : vector<8x128xf32>
    %103 = arith.addf %101, %102 : vector<8x128xf32>
    %104 = arith.addi %4, %c1_i32 : i32
    %105 = vector.broadcast %104 : i32 to vector<8x1xi32>
    %106 = arith.cmpi slt, %105, %3 : vector<8x1xi32>
    %cst_39 = arith.constant 0.000000e+00 : f32
    %107 = vector.shape_cast %106 : vector<8x1xi1> to vector<8x1xi1>
    %108 = vector.broadcast %107 : vector<8x1xi1> to vector<8x128xi1>
    %109 = vector.broadcast %cst_39 : f32 to vector<8x128xf32>
    %110 = arith.select %108, %103, %109 : vector<8x128xi1>, vector<8x128xf32>
    %111 = arith.truncf %110 : vector<8x128xf32> to vector<8x128xbf16>
    %112 = arith.index_cast %c1_i32 : i32 to index
    %c0_40 = arith.constant 0 : index
    %c0_41 = arith.constant 0 : index
    %113 = vector.load %arg8[%112, %c0_40, %c0_41] : memref<8x8x128xbf16, #tpu.memory_space<vmem>>, vector<1x8x128xbf16>
    %114 = vector.shape_cast %113 : vector<1x8x128xbf16> to vector<8x128xbf16>
    %115 = vector.shape_cast %111 : vector<8x128xbf16> to vector<1x8x128xbf16>
    tpu.vector_store %arg8[%112, %c0_40, %c0_41], %115 {strides = array<i32>} : memref<8x8x128xbf16, #tpu.memory_space<vmem>>, vector<1x8x128xbf16>,
    %116 = arith.addf %63, %110 : vector<8x128xf32>
    %c2_i32 = arith.constant 2 : i32
    %117 = arith.index_cast %c2_i32 : i32 to index
    %c0_42 = arith.constant 0 : index
    %c0_43 = arith.constant 0 : index
    %118 = vector.load %arg3[%117, %c0_42, %c0_43] : memref<8x8x128xbf16, #tpu.memory_space<vmem>>, vector<1x8x128xbf16>
    %119 = vector.shape_cast %118 : vector<1x8x128xbf16> to vector<8x128xbf16>
    %cst_44 = arith.constant dense<0.000000e+00> : vector<8x384xf32>
    %120 = tpu.matmul %119, %5, %cst_44 {dimension_numbers = #tpu.dot_dimension_numbers<[1], [0], [0], [1], [0, 0, 1, 1], [], []>} : vector<8x128xbf16>, vector<128x384xbf16>, vector<8x384xf32> -> vector<8x384xf32>
    %121 = vector.broadcast %7 : vector<1x384xf32> to vector<8x384xf32>
    %122 = arith.addf %120, %121 : vector<8x384xf32>
    %123 = arith.truncf %103 : vector<8x128xf32> to vector<8x128xbf16>
    %cst_45 = arith.constant dense<0.000000e+00> : vector<8x384xf32>
    %124 = tpu.matmul %123, %6, %cst_45 {dimension_numbers = #tpu.dot_dimension_numbers<[1], [0], [0], [1], [0, 0, 1, 1], [], []>} : vector<8x128xbf16>, vector<128x384xbf16>, vector<8x384xf32> -> vector<8x384xf32>
    %125 = vector.broadcast %8 : vector<1x384xf32> to vector<8x384xf32>
    %126 = arith.addf %124, %125 : vector<8x384xf32>
    %127 = vector.extract_strided_slice %122 {offsets = [0, 0], sizes = [8, 128], strides = [1, 1]} : vector<8x384xf32> to vector<8x128xf32>
    %128 = vector.extract_strided_slice %126 {offsets = [0, 0], sizes = [8, 128], strides = [1, 1]} : vector<8x384xf32> to vector<8x128xf32>
    %129 = arith.addf %127, %128 : vector<8x128xf32>
    %cst_46 = arith.constant 5.000000e-01 : f32
    %130 = vector.broadcast %cst_46 : f32 to vector<8x128xf32>
    %131 = arith.mulf %130, %129 : vector<8x128xf32>
    %132 = math.tanh %131 : vector<8x128xf32>
    %cst_47 = arith.constant 5.000000e-01 : f32
    %133 = vector.broadcast %cst_47 : f32 to vector<8x128xf32>
    %134 = arith.mulf %133, %132 : vector<8x128xf32>
    %cst_48 = arith.constant 5.000000e-01 : f32
    %135 = vector.broadcast %cst_48 : f32 to vector<8x128xf32>
    %136 = arith.addf %134, %135 : vector<8x128xf32>
    %137 = vector.extract_strided_slice %122 {offsets = [0, 128], sizes = [8, 128], strides = [1, 1]} : vector<8x384xf32> to vector<8x128xf32>
    %138 = vector.extract_strided_slice %126 {offsets = [0, 128], sizes = [8, 128], strides = [1, 1]} : vector<8x384xf32> to vector<8x128xf32>
    %139 = arith.addf %137, %138 : vector<8x128xf32>
    %cst_49 = arith.constant 5.000000e-01 : f32
    %140 = vector.broadcast %cst_49 : f32 to vector<8x128xf32>
    %141 = arith.mulf %140, %139 : vector<8x128xf32>
    %142 = math.tanh %141 : vector<8x128xf32>
    %cst_50 = arith.constant 5.000000e-01 : f32
    %143 = vector.broadcast %cst_50 : f32 to vector<8x128xf32>
    %144 = arith.mulf %143, %142 : vector<8x128xf32>
    %cst_51 = arith.constant 5.000000e-01 : f32
    %145 = vector.broadcast %cst_51 : f32 to vector<8x128xf32>
    %146 = arith.addf %144, %145 : vector<8x128xf32>
    %147 = vector.extract_strided_slice %122 {offsets = [0, 256], sizes = [8, 128], strides = [1, 1]} : vector<8x384xf32> to vector<8x128xf32>
    %148 = vector.extract_strided_slice %126 {offsets = [0, 256], sizes = [8, 128], strides = [1, 1]} : vector<8x384xf32> to vector<8x128xf32>
    %149 = arith.mulf %136, %148 : vector<8x128xf32>
    %150 = arith.addf %147, %149 : vector<8x128xf32>
    %151 = math.tanh %150 : vector<8x128xf32>
    %cst_52 = arith.constant 1.000000e+00 : f32
    %152 = vector.broadcast %cst_52 : f32 to vector<8x128xf32>
    %153 = arith.subf %152, %146 : vector<8x128xf32>
    %154 = arith.mulf %153, %151 : vector<8x128xf32>
    %155 = arith.mulf %146, %103 : vector<8x128xf32>
    %156 = arith.addf %154, %155 : vector<8x128xf32>
    %157 = arith.addi %4, %c2_i32 : i32
    %158 = vector.broadcast %157 : i32 to vector<8x1xi32>
    %159 = arith.cmpi slt, %158, %3 : vector<8x1xi32>
    %cst_53 = arith.constant 0.000000e+00 : f32
    %160 = vector.shape_cast %159 : vector<8x1xi1> to vector<8x1xi1>
    %161 = vector.broadcast %160 : vector<8x1xi1> to vector<8x128xi1>
    %162 = vector.broadcast %cst_53 : f32 to vector<8x128xf32>
    %163 = arith.select %161, %156, %162 : vector<8x128xi1>, vector<8x128xf32>
    %164 = arith.truncf %163 : vector<8x128xf32> to vector<8x128xbf16>
    %165 = arith.index_cast %c2_i32 : i32 to index
    %c0_54 = arith.constant 0 : index
    %c0_55 = arith.constant 0 : index
    %166 = vector.load %arg8[%165, %c0_54, %c0_55] : memref<8x8x128xbf16, #tpu.memory_space<vmem>>, vector<1x8x128xbf16>
    %167 = vector.shape_cast %166 : vector<1x8x128xbf16> to vector<8x128xbf16>
    %168 = vector.shape_cast %164 : vector<8x128xbf16> to vector<1x8x128xbf16>
    tpu.vector_store %arg8[%165, %c0_54, %c0_55], %168 {strides = array<i32>} : memref<8x8x128xbf16, #tpu.memory_space<vmem>>, vector<1x8x128xbf16>,
    %169 = arith.addf %116, %163 : vector<8x128xf32>
    %c3_i32 = arith.constant 3 : i32
    %170 = arith.index_cast %c3_i32 : i32 to index
    %c0_56 = arith.constant 0 : index
    %c0_57 = arith.constant 0 : index
    %171 = vector.load %arg3[%170, %c0_56, %c0_57] : memref<8x8x128xbf16, #tpu.memory_space<vmem>>, vector<1x8x128xbf16>
    %172 = vector.shape_cast %171 : vector<1x8x128xbf16> to vector<8x128xbf16>
    %cst_58 = arith.constant dense<0.000000e+00> : vector<8x384xf32>
    %173 = tpu.matmul %172, %5, %cst_58 {dimension_numbers = #tpu.dot_dimension_numbers<[1], [0], [0], [1], [0, 0, 1, 1], [], []>} : vector<8x128xbf16>, vector<128x384xbf16>, vector<8x384xf32> -> vector<8x384xf32>
    %174 = vector.broadcast %7 : vector<1x384xf32> to vector<8x384xf32>
    %175 = arith.addf %173, %174 : vector<8x384xf32>
    %176 = arith.truncf %156 : vector<8x128xf32> to vector<8x128xbf16>
    %cst_59 = arith.constant dense<0.000000e+00> : vector<8x384xf32>
    %177 = tpu.matmul %176, %6, %cst_59 {dimension_numbers = #tpu.dot_dimension_numbers<[1], [0], [0], [1], [0, 0, 1, 1], [], []>} : vector<8x128xbf16>, vector<128x384xbf16>, vector<8x384xf32> -> vector<8x384xf32>
    %178 = vector.broadcast %8 : vector<1x384xf32> to vector<8x384xf32>
    %179 = arith.addf %177, %178 : vector<8x384xf32>
    %180 = vector.extract_strided_slice %175 {offsets = [0, 0], sizes = [8, 128], strides = [1, 1]} : vector<8x384xf32> to vector<8x128xf32>
    %181 = vector.extract_strided_slice %179 {offsets = [0, 0], sizes = [8, 128], strides = [1, 1]} : vector<8x384xf32> to vector<8x128xf32>
    %182 = arith.addf %180, %181 : vector<8x128xf32>
    %cst_60 = arith.constant 5.000000e-01 : f32
    %183 = vector.broadcast %cst_60 : f32 to vector<8x128xf32>
    %184 = arith.mulf %183, %182 : vector<8x128xf32>
    %185 = math.tanh %184 : vector<8x128xf32>
    %cst_61 = arith.constant 5.000000e-01 : f32
    %186 = vector.broadcast %cst_61 : f32 to vector<8x128xf32>
    %187 = arith.mulf %186, %185 : vector<8x128xf32>
    %cst_62 = arith.constant 5.000000e-01 : f32
    %188 = vector.broadcast %cst_62 : f32 to vector<8x128xf32>
    %189 = arith.addf %187, %188 : vector<8x128xf32>
    %190 = vector.extract_strided_slice %175 {offsets = [0, 128], sizes = [8, 128], strides = [1, 1]} : vector<8x384xf32> to vector<8x128xf32>
    %191 = vector.extract_strided_slice %179 {offsets = [0, 128], sizes = [8, 128], strides = [1, 1]} : vector<8x384xf32> to vector<8x128xf32>
    %192 = arith.addf %190, %191 : vector<8x128xf32>
    %cst_63 = arith.constant 5.000000e-01 : f32
    %193 = vector.broadcast %cst_63 : f32 to vector<8x128xf32>
    %194 = arith.mulf %193, %192 : vector<8x128xf32>
    %195 = math.tanh %194 : vector<8x128xf32>
    %cst_64 = arith.constant 5.000000e-01 : f32
    %196 = vector.broadcast %cst_64 : f32 to vector<8x128xf32>
    %197 = arith.mulf %196, %195 : vector<8x128xf32>
    %cst_65 = arith.constant 5.000000e-01 : f32
    %198 = vector.broadcast %cst_65 : f32 to vector<8x128xf32>
    %199 = arith.addf %197, %198 : vector<8x128xf32>
    %200 = vector.extract_strided_slice %175 {offsets = [0, 256], sizes = [8, 128], strides = [1, 1]} : vector<8x384xf32> to vector<8x128xf32>
    %201 = vector.extract_strided_slice %179 {offsets = [0, 256], sizes = [8, 128], strides = [1, 1]} : vector<8x384xf32> to vector<8x128xf32>
    %202 = arith.mulf %189, %201 : vector<8x128xf32>
    %203 = arith.addf %200, %202 : vector<8x128xf32>
    %204 = math.tanh %203 : vector<8x128xf32>
    %cst_66 = arith.constant 1.000000e+00 : f32
    %205 = vector.broadcast %cst_66 : f32 to vector<8x128xf32>
    %206 = arith.subf %205, %199 : vector<8x128xf32>
    %207 = arith.mulf %206, %204 : vector<8x128xf32>
    %208 = arith.mulf %199, %156 : vector<8x128xf32>
    %209 = arith.addf %207, %208 : vector<8x128xf32>
    %210 = arith.addi %4, %c3_i32 : i32
    %211 = vector.broadcast %210 : i32 to vector<8x1xi32>
    %212 = arith.cmpi slt, %211, %3 : vector<8x1xi32>
    %cst_67 = arith.constant 0.000000e+00 : f32
    %213 = vector.shape_cast %212 : vector<8x1xi1> to vector<8x1xi1>
    %214 = vector.broadcast %213 : vector<8x1xi1> to vector<8x128xi1>
    %215 = vector.broadcast %cst_67 : f32 to vector<8x128xf32>
    %216 = arith.select %214, %209, %215 : vector<8x128xi1>, vector<8x128xf32>
    %217 = arith.truncf %216 : vector<8x128xf32> to vector<8x128xbf16>
    %218 = arith.index_cast %c3_i32 : i32 to index
    %c0_68 = arith.constant 0 : index
    %c0_69 = arith.constant 0 : index
    %219 = vector.load %arg8[%218, %c0_68, %c0_69] : memref<8x8x128xbf16, #tpu.memory_space<vmem>>, vector<1x8x128xbf16>
    %220 = vector.shape_cast %219 : vector<1x8x128xbf16> to vector<8x128xbf16>
    %221 = vector.shape_cast %217 : vector<8x128xbf16> to vector<1x8x128xbf16>
    tpu.vector_store %arg8[%218, %c0_68, %c0_69], %221 {strides = array<i32>} : memref<8x8x128xbf16, #tpu.memory_space<vmem>>, vector<1x8x128xbf16>,
    %222 = arith.addf %169, %216 : vector<8x128xf32>
    %c4_i32 = arith.constant 4 : i32
    %223 = arith.index_cast %c4_i32 : i32 to index
    %c0_70 = arith.constant 0 : index
    %c0_71 = arith.constant 0 : index
    %224 = vector.load %arg3[%223, %c0_70, %c0_71] : memref<8x8x128xbf16, #tpu.memory_space<vmem>>, vector<1x8x128xbf16>
    %225 = vector.shape_cast %224 : vector<1x8x128xbf16> to vector<8x128xbf16>
    %cst_72 = arith.constant dense<0.000000e+00> : vector<8x384xf32>
    %226 = tpu.matmul %225, %5, %cst_72 {dimension_numbers = #tpu.dot_dimension_numbers<[1], [0], [0], [1], [0, 0, 1, 1], [], []>} : vector<8x128xbf16>, vector<128x384xbf16>, vector<8x384xf32> -> vector<8x384xf32>
    %227 = vector.broadcast %7 : vector<1x384xf32> to vector<8x384xf32>
    %228 = arith.addf %226, %227 : vector<8x384xf32>
    %229 = arith.truncf %209 : vector<8x128xf32> to vector<8x128xbf16>
    %cst_73 = arith.constant dense<0.000000e+00> : vector<8x384xf32>
    %230 = tpu.matmul %229, %6, %cst_73 {dimension_numbers = #tpu.dot_dimension_numbers<[1], [0], [0], [1], [0, 0, 1, 1], [], []>} : vector<8x128xbf16>, vector<128x384xbf16>, vector<8x384xf32> -> vector<8x384xf32>
    %231 = vector.broadcast %8 : vector<1x384xf32> to vector<8x384xf32>
    %232 = arith.addf %230, %231 : vector<8x384xf32>
    %233 = vector.extract_strided_slice %228 {offsets = [0, 0], sizes = [8, 128], strides = [1, 1]} : vector<8x384xf32> to vector<8x128xf32>
    %234 = vector.extract_strided_slice %232 {offsets = [0, 0], sizes = [8, 128], strides = [1, 1]} : vector<8x384xf32> to vector<8x128xf32>
    %235 = arith.addf %233, %234 : vector<8x128xf32>
    %cst_74 = arith.constant 5.000000e-01 : f32
    %236 = vector.broadcast %cst_74 : f32 to vector<8x128xf32>
    %237 = arith.mulf %236, %235 : vector<8x128xf32>
    %238 = math.tanh %237 : vector<8x128xf32>
    %cst_75 = arith.constant 5.000000e-01 : f32
    %239 = vector.broadcast %cst_75 : f32 to vector<8x128xf32>
    %240 = arith.mulf %239, %238 : vector<8x128xf32>
    %cst_76 = arith.constant 5.000000e-01 : f32
    %241 = vector.broadcast %cst_76 : f32 to vector<8x128xf32>
    %242 = arith.addf %240, %241 : vector<8x128xf32>
    %243 = vector.extract_strided_slice %228 {offsets = [0, 128], sizes = [8, 128], strides = [1, 1]} : vector<8x384xf32> to vector<8x128xf32>
    %244 = vector.extract_strided_slice %232 {offsets = [0, 128], sizes = [8, 128], strides = [1, 1]} : vector<8x384xf32> to vector<8x128xf32>
    %245 = arith.addf %243, %244 : vector<8x128xf32>
    %cst_77 = arith.constant 5.000000e-01 : f32
    %246 = vector.broadcast %cst_77 : f32 to vector<8x128xf32>
    %247 = arith.mulf %246, %245 : vector<8x128xf32>
    %248 = math.tanh %247 : vector<8x128xf32>
    %cst_78 = arith.constant 5.000000e-01 : f32
    %249 = vector.broadcast %cst_78 : f32 to vector<8x128xf32>
    %250 = arith.mulf %249, %248 : vector<8x128xf32>
    %cst_79 = arith.constant 5.000000e-01 : f32
    %251 = vector.broadcast %cst_79 : f32 to vector<8x128xf32>
    %252 = arith.addf %250, %251 : vector<8x128xf32>
    %253 = vector.extract_strided_slice %228 {offsets = [0, 256], sizes = [8, 128], strides = [1, 1]} : vector<8x384xf32> to vector<8x128xf32>
    %254 = vector.extract_strided_slice %232 {offsets = [0, 256], sizes = [8, 128], strides = [1, 1]} : vector<8x384xf32> to vector<8x128xf32>
    %255 = arith.mulf %242, %254 : vector<8x128xf32>
    %256 = arith.addf %253, %255 : vector<8x128xf32>
    %257 = math.tanh %256 : vector<8x128xf32>
    %cst_80 = arith.constant 1.000000e+00 : f32
    %258 = vector.broadcast %cst_80 : f32 to vector<8x128xf32>
    %259 = arith.subf %258, %252 : vector<8x128xf32>
    %260 = arith.mulf %259, %257 : vector<8x128xf32>
    %261 = arith.mulf %252, %209 : vector<8x128xf32>
    %262 = arith.addf %260, %261 : vector<8x128xf32>
    %263 = arith.addi %4, %c4_i32 : i32
    %264 = vector.broadcast %263 : i32 to vector<8x1xi32>
    %265 = arith.cmpi slt, %264, %3 : vector<8x1xi32>
    %cst_81 = arith.constant 0.000000e+00 : f32
    %266 = vector.shape_cast %265 : vector<8x1xi1> to vector<8x1xi1>
    %267 = vector.broadcast %266 : vector<8x1xi1> to vector<8x128xi1>
    %268 = vector.broadcast %cst_81 : f32 to vector<8x128xf32>
    %269 = arith.select %267, %262, %268 : vector<8x128xi1>, vector<8x128xf32>
    %270 = arith.truncf %269 : vector<8x128xf32> to vector<8x128xbf16>
    %271 = arith.index_cast %c4_i32 : i32 to index
    %c0_82 = arith.constant 0 : index
    %c0_83 = arith.constant 0 : index
    %272 = vector.load %arg8[%271, %c0_82, %c0_83] : memref<8x8x128xbf16, #tpu.memory_space<vmem>>, vector<1x8x128xbf16>
    %273 = vector.shape_cast %272 : vector<1x8x128xbf16> to vector<8x128xbf16>
    %274 = vector.shape_cast %270 : vector<8x128xbf16> to vector<1x8x128xbf16>
    tpu.vector_store %arg8[%271, %c0_82, %c0_83], %274 {strides = array<i32>} : memref<8x8x128xbf16, #tpu.memory_space<vmem>>, vector<1x8x128xbf16>,
    %275 = arith.addf %222, %269 : vector<8x128xf32>
    %c5_i32 = arith.constant 5 : i32
    %276 = arith.index_cast %c5_i32 : i32 to index
    %c0_84 = arith.constant 0 : index
    %c0_85 = arith.constant 0 : index
    %277 = vector.load %arg3[%276, %c0_84, %c0_85] : memref<8x8x128xbf16, #tpu.memory_space<vmem>>, vector<1x8x128xbf16>
    %278 = vector.shape_cast %277 : vector<1x8x128xbf16> to vector<8x128xbf16>
    %cst_86 = arith.constant dense<0.000000e+00> : vector<8x384xf32>
    %279 = tpu.matmul %278, %5, %cst_86 {dimension_numbers = #tpu.dot_dimension_numbers<[1], [0], [0], [1], [0, 0, 1, 1], [], []>} : vector<8x128xbf16>, vector<128x384xbf16>, vector<8x384xf32> -> vector<8x384xf32>
    %280 = vector.broadcast %7 : vector<1x384xf32> to vector<8x384xf32>
    %281 = arith.addf %279, %280 : vector<8x384xf32>
    %282 = arith.truncf %262 : vector<8x128xf32> to vector<8x128xbf16>
    %cst_87 = arith.constant dense<0.000000e+00> : vector<8x384xf32>
    %283 = tpu.matmul %282, %6, %cst_87 {dimension_numbers = #tpu.dot_dimension_numbers<[1], [0], [0], [1], [0, 0, 1, 1], [], []>} : vector<8x128xbf16>, vector<128x384xbf16>, vector<8x384xf32> -> vector<8x384xf32>
    %284 = vector.broadcast %8 : vector<1x384xf32> to vector<8x384xf32>
    %285 = arith.addf %283, %284 : vector<8x384xf32>
    %286 = vector.extract_strided_slice %281 {offsets = [0, 0], sizes = [8, 128], strides = [1, 1]} : vector<8x384xf32> to vector<8x128xf32>
    %287 = vector.extract_strided_slice %285 {offsets = [0, 0], sizes = [8, 128], strides = [1, 1]} : vector<8x384xf32> to vector<8x128xf32>
    %288 = arith.addf %286, %287 : vector<8x128xf32>
    %cst_88 = arith.constant 5.000000e-01 : f32
    %289 = vector.broadcast %cst_88 : f32 to vector<8x128xf32>
    %290 = arith.mulf %289, %288 : vector<8x128xf32>
    %291 = math.tanh %290 : vector<8x128xf32>
    %cst_89 = arith.constant 5.000000e-01 : f32
    %292 = vector.broadcast %cst_89 : f32 to vector<8x128xf32>
    %293 = arith.mulf %292, %291 : vector<8x128xf32>
    %cst_90 = arith.constant 5.000000e-01 : f32
    %294 = vector.broadcast %cst_90 : f32 to vector<8x128xf32>
    %295 = arith.addf %293, %294 : vector<8x128xf32>
    %296 = vector.extract_strided_slice %281 {offsets = [0, 128], sizes = [8, 128], strides = [1, 1]} : vector<8x384xf32> to vector<8x128xf32>
    %297 = vector.extract_strided_slice %285 {offsets = [0, 128], sizes = [8, 128], strides = [1, 1]} : vector<8x384xf32> to vector<8x128xf32>
    %298 = arith.addf %296, %297 : vector<8x128xf32>
    %cst_91 = arith.constant 5.000000e-01 : f32
    %299 = vector.broadcast %cst_91 : f32 to vector<8x128xf32>
    %300 = arith.mulf %299, %298 : vector<8x128xf32>
    %301 = math.tanh %300 : vector<8x128xf32>
    %cst_92 = arith.constant 5.000000e-01 : f32
    %302 = vector.broadcast %cst_92 : f32 to vector<8x128xf32>
    %303 = arith.mulf %302, %301 : vector<8x128xf32>
    %cst_93 = arith.constant 5.000000e-01 : f32
    %304 = vector.broadcast %cst_93 : f32 to vector<8x128xf32>
    %305 = arith.addf %303, %304 : vector<8x128xf32>
    %306 = vector.extract_strided_slice %281 {offsets = [0, 256], sizes = [8, 128], strides = [1, 1]} : vector<8x384xf32> to vector<8x128xf32>
    %307 = vector.extract_strided_slice %285 {offsets = [0, 256], sizes = [8, 128], strides = [1, 1]} : vector<8x384xf32> to vector<8x128xf32>
    %308 = arith.mulf %295, %307 : vector<8x128xf32>
    %309 = arith.addf %306, %308 : vector<8x128xf32>
    %310 = math.tanh %309 : vector<8x128xf32>
    %cst_94 = arith.constant 1.000000e+00 : f32
    %311 = vector.broadcast %cst_94 : f32 to vector<8x128xf32>
    %312 = arith.subf %311, %305 : vector<8x128xf32>
    %313 = arith.mulf %312, %310 : vector<8x128xf32>
    %314 = arith.mulf %305, %262 : vector<8x128xf32>
    %315 = arith.addf %313, %314 : vector<8x128xf32>
    %316 = arith.addi %4, %c5_i32 : i32
    %317 = vector.broadcast %316 : i32 to vector<8x1xi32>
    %318 = arith.cmpi slt, %317, %3 : vector<8x1xi32>
    %cst_95 = arith.constant 0.000000e+00 : f32
    %319 = vector.shape_cast %318 : vector<8x1xi1> to vector<8x1xi1>
    %320 = vector.broadcast %319 : vector<8x1xi1> to vector<8x128xi1>
    %321 = vector.broadcast %cst_95 : f32 to vector<8x128xf32>
    %322 = arith.select %320, %315, %321 : vector<8x128xi1>, vector<8x128xf32>
    %323 = arith.truncf %322 : vector<8x128xf32> to vector<8x128xbf16>
    %324 = arith.index_cast %c5_i32 : i32 to index
    %c0_96 = arith.constant 0 : index
    %c0_97 = arith.constant 0 : index
    %325 = vector.load %arg8[%324, %c0_96, %c0_97] : memref<8x8x128xbf16, #tpu.memory_space<vmem>>, vector<1x8x128xbf16>
    %326 = vector.shape_cast %325 : vector<1x8x128xbf16> to vector<8x128xbf16>
    %327 = vector.shape_cast %323 : vector<8x128xbf16> to vector<1x8x128xbf16>
    tpu.vector_store %arg8[%324, %c0_96, %c0_97], %327 {strides = array<i32>} : memref<8x8x128xbf16, #tpu.memory_space<vmem>>, vector<1x8x128xbf16>,
    %328 = arith.addf %275, %322 : vector<8x128xf32>
    %c6_i32 = arith.constant 6 : i32
    %329 = arith.index_cast %c6_i32 : i32 to index
    %c0_98 = arith.constant 0 : index
    %c0_99 = arith.constant 0 : index
    %330 = vector.load %arg3[%329, %c0_98, %c0_99] : memref<8x8x128xbf16, #tpu.memory_space<vmem>>, vector<1x8x128xbf16>
    %331 = vector.shape_cast %330 : vector<1x8x128xbf16> to vector<8x128xbf16>
    %cst_100 = arith.constant dense<0.000000e+00> : vector<8x384xf32>
    %332 = tpu.matmul %331, %5, %cst_100 {dimension_numbers = #tpu.dot_dimension_numbers<[1], [0], [0], [1], [0, 0, 1, 1], [], []>} : vector<8x128xbf16>, vector<128x384xbf16>, vector<8x384xf32> -> vector<8x384xf32>
    %333 = vector.broadcast %7 : vector<1x384xf32> to vector<8x384xf32>
    %334 = arith.addf %332, %333 : vector<8x384xf32>
    %335 = arith.truncf %315 : vector<8x128xf32> to vector<8x128xbf16>
    %cst_101 = arith.constant dense<0.000000e+00> : vector<8x384xf32>
    %336 = tpu.matmul %335, %6, %cst_101 {dimension_numbers = #tpu.dot_dimension_numbers<[1], [0], [0], [1], [0, 0, 1, 1], [], []>} : vector<8x128xbf16>, vector<128x384xbf16>, vector<8x384xf32> -> vector<8x384xf32>
    %337 = vector.broadcast %8 : vector<1x384xf32> to vector<8x384xf32>
    %338 = arith.addf %336, %337 : vector<8x384xf32>
    %339 = vector.extract_strided_slice %334 {offsets = [0, 0], sizes = [8, 128], strides = [1, 1]} : vector<8x384xf32> to vector<8x128xf32>
    %340 = vector.extract_strided_slice %338 {offsets = [0, 0], sizes = [8, 128], strides = [1, 1]} : vector<8x384xf32> to vector<8x128xf32>
    %341 = arith.addf %339, %340 : vector<8x128xf32>
    %cst_102 = arith.constant 5.000000e-01 : f32
    %342 = vector.broadcast %cst_102 : f32 to vector<8x128xf32>
    %343 = arith.mulf %342, %341 : vector<8x128xf32>
    %344 = math.tanh %343 : vector<8x128xf32>
    %cst_103 = arith.constant 5.000000e-01 : f32
    %345 = vector.broadcast %cst_103 : f32 to vector<8x128xf32>
    %346 = arith.mulf %345, %344 : vector<8x128xf32>
    %cst_104 = arith.constant 5.000000e-01 : f32
    %347 = vector.broadcast %cst_104 : f32 to vector<8x128xf32>
    %348 = arith.addf %346, %347 : vector<8x128xf32>
    %349 = vector.extract_strided_slice %334 {offsets = [0, 128], sizes = [8, 128], strides = [1, 1]} : vector<8x384xf32> to vector<8x128xf32>
    %350 = vector.extract_strided_slice %338 {offsets = [0, 128], sizes = [8, 128], strides = [1, 1]} : vector<8x384xf32> to vector<8x128xf32>
    %351 = arith.addf %349, %350 : vector<8x128xf32>
    %cst_105 = arith.constant 5.000000e-01 : f32
    %352 = vector.broadcast %cst_105 : f32 to vector<8x128xf32>
    %353 = arith.mulf %352, %351 : vector<8x128xf32>
    %354 = math.tanh %353 : vector<8x128xf32>
    %cst_106 = arith.constant 5.000000e-01 : f32
    %355 = vector.broadcast %cst_106 : f32 to vector<8x128xf32>
    %356 = arith.mulf %355, %354 : vector<8x128xf32>
    %cst_107 = arith.constant 5.000000e-01 : f32
    %357 = vector.broadcast %cst_107 : f32 to vector<8x128xf32>
    %358 = arith.addf %356, %357 : vector<8x128xf32>
    %359 = vector.extract_strided_slice %334 {offsets = [0, 256], sizes = [8, 128], strides = [1, 1]} : vector<8x384xf32> to vector<8x128xf32>
    %360 = vector.extract_strided_slice %338 {offsets = [0, 256], sizes = [8, 128], strides = [1, 1]} : vector<8x384xf32> to vector<8x128xf32>
    %361 = arith.mulf %348, %360 : vector<8x128xf32>
    %362 = arith.addf %359, %361 : vector<8x128xf32>
    %363 = math.tanh %362 : vector<8x128xf32>
    %cst_108 = arith.constant 1.000000e+00 : f32
    %364 = vector.broadcast %cst_108 : f32 to vector<8x128xf32>
    %365 = arith.subf %364, %358 : vector<8x128xf32>
    %366 = arith.mulf %365, %363 : vector<8x128xf32>
    %367 = arith.mulf %358, %315 : vector<8x128xf32>
    %368 = arith.addf %366, %367 : vector<8x128xf32>
    %369 = arith.addi %4, %c6_i32 : i32
    %370 = vector.broadcast %369 : i32 to vector<8x1xi32>
    %371 = arith.cmpi slt, %370, %3 : vector<8x1xi32>
    %cst_109 = arith.constant 0.000000e+00 : f32
    %372 = vector.shape_cast %371 : vector<8x1xi1> to vector<8x1xi1>
    %373 = vector.broadcast %372 : vector<8x1xi1> to vector<8x128xi1>
    %374 = vector.broadcast %cst_109 : f32 to vector<8x128xf32>
    %375 = arith.select %373, %368, %374 : vector<8x128xi1>, vector<8x128xf32>
    %376 = arith.truncf %375 : vector<8x128xf32> to vector<8x128xbf16>
    %377 = arith.index_cast %c6_i32 : i32 to index
    %c0_110 = arith.constant 0 : index
    %c0_111 = arith.constant 0 : index
    %378 = vector.load %arg8[%377, %c0_110, %c0_111] : memref<8x8x128xbf16, #tpu.memory_space<vmem>>, vector<1x8x128xbf16>
    %379 = vector.shape_cast %378 : vector<1x8x128xbf16> to vector<8x128xbf16>
    %380 = vector.shape_cast %376 : vector<8x128xbf16> to vector<1x8x128xbf16>
    tpu.vector_store %arg8[%377, %c0_110, %c0_111], %380 {strides = array<i32>} : memref<8x8x128xbf16, #tpu.memory_space<vmem>>, vector<1x8x128xbf16>,
    %381 = arith.addf %328, %375 : vector<8x128xf32>
    %c7_i32 = arith.constant 7 : i32
    %382 = arith.index_cast %c7_i32 : i32 to index
    %c0_112 = arith.constant 0 : index
    %c0_113 = arith.constant 0 : index
    %383 = vector.load %arg3[%382, %c0_112, %c0_113] : memref<8x8x128xbf16, #tpu.memory_space<vmem>>, vector<1x8x128xbf16>
    %384 = vector.shape_cast %383 : vector<1x8x128xbf16> to vector<8x128xbf16>
    %cst_114 = arith.constant dense<0.000000e+00> : vector<8x384xf32>
    %385 = tpu.matmul %384, %5, %cst_114 {dimension_numbers = #tpu.dot_dimension_numbers<[1], [0], [0], [1], [0, 0, 1, 1], [], []>} : vector<8x128xbf16>, vector<128x384xbf16>, vector<8x384xf32> -> vector<8x384xf32>
    %386 = vector.broadcast %7 : vector<1x384xf32> to vector<8x384xf32>
    %387 = arith.addf %385, %386 : vector<8x384xf32>
    %388 = arith.truncf %368 : vector<8x128xf32> to vector<8x128xbf16>
    %cst_115 = arith.constant dense<0.000000e+00> : vector<8x384xf32>
    %389 = tpu.matmul %388, %6, %cst_115 {dimension_numbers = #tpu.dot_dimension_numbers<[1], [0], [0], [1], [0, 0, 1, 1], [], []>} : vector<8x128xbf16>, vector<128x384xbf16>, vector<8x384xf32> -> vector<8x384xf32>
    %390 = vector.broadcast %8 : vector<1x384xf32> to vector<8x384xf32>
    %391 = arith.addf %389, %390 : vector<8x384xf32>
    %392 = vector.extract_strided_slice %387 {offsets = [0, 0], sizes = [8, 128], strides = [1, 1]} : vector<8x384xf32> to vector<8x128xf32>
    %393 = vector.extract_strided_slice %391 {offsets = [0, 0], sizes = [8, 128], strides = [1, 1]} : vector<8x384xf32> to vector<8x128xf32>
    %394 = arith.addf %392, %393 : vector<8x128xf32>
    %cst_116 = arith.constant 5.000000e-01 : f32
    %395 = vector.broadcast %cst_116 : f32 to vector<8x128xf32>
    %396 = arith.mulf %395, %394 : vector<8x128xf32>
    %397 = math.tanh %396 : vector<8x128xf32>
    %cst_117 = arith.constant 5.000000e-01 : f32
    %398 = vector.broadcast %cst_117 : f32 to vector<8x128xf32>
    %399 = arith.mulf %398, %397 : vector<8x128xf32>
    %cst_118 = arith.constant 5.000000e-01 : f32
    %400 = vector.broadcast %cst_118 : f32 to vector<8x128xf32>
    %401 = arith.addf %399, %400 : vector<8x128xf32>
    %402 = vector.extract_strided_slice %387 {offsets = [0, 128], sizes = [8, 128], strides = [1, 1]} : vector<8x384xf32> to vector<8x128xf32>
    %403 = vector.extract_strided_slice %391 {offsets = [0, 128], sizes = [8, 128], strides = [1, 1]} : vector<8x384xf32> to vector<8x128xf32>
    %404 = arith.addf %402, %403 : vector<8x128xf32>
    %cst_119 = arith.constant 5.000000e-01 : f32
    %405 = vector.broadcast %cst_119 : f32 to vector<8x128xf32>
    %406 = arith.mulf %405, %404 : vector<8x128xf32>
    %407 = math.tanh %406 : vector<8x128xf32>
    %cst_120 = arith.constant 5.000000e-01 : f32
    %408 = vector.broadcast %cst_120 : f32 to vector<8x128xf32>
    %409 = arith.mulf %408, %407 : vector<8x128xf32>
    %cst_121 = arith.constant 5.000000e-01 : f32
    %410 = vector.broadcast %cst_121 : f32 to vector<8x128xf32>
    %411 = arith.addf %409, %410 : vector<8x128xf32>
    %412 = vector.extract_strided_slice %387 {offsets = [0, 256], sizes = [8, 128], strides = [1, 1]} : vector<8x384xf32> to vector<8x128xf32>
    %413 = vector.extract_strided_slice %391 {offsets = [0, 256], sizes = [8, 128], strides = [1, 1]} : vector<8x384xf32> to vector<8x128xf32>
    %414 = arith.mulf %401, %413 : vector<8x128xf32>
    %415 = arith.addf %412, %414 : vector<8x128xf32>
    %416 = math.tanh %415 : vector<8x128xf32>
    %cst_122 = arith.constant 1.000000e+00 : f32
    %417 = vector.broadcast %cst_122 : f32 to vector<8x128xf32>
    %418 = arith.subf %417, %411 : vector<8x128xf32>
    %419 = arith.mulf %418, %416 : vector<8x128xf32>
    %420 = arith.mulf %411, %368 : vector<8x128xf32>
    %421 = arith.addf %419, %420 : vector<8x128xf32>
    %422 = arith.addi %4, %c7_i32 : i32
    %423 = vector.broadcast %422 : i32 to vector<8x1xi32>
    %424 = arith.cmpi slt, %423, %3 : vector<8x1xi32>
    %cst_123 = arith.constant 0.000000e+00 : f32
    %425 = vector.shape_cast %424 : vector<8x1xi1> to vector<8x1xi1>
    %426 = vector.broadcast %425 : vector<8x1xi1> to vector<8x128xi1>
    %427 = vector.broadcast %cst_123 : f32 to vector<8x128xf32>
    %428 = arith.select %426, %421, %427 : vector<8x128xi1>, vector<8x128xf32>
    %429 = arith.truncf %428 : vector<8x128xf32> to vector<8x128xbf16>
    %430 = arith.index_cast %c7_i32 : i32 to index
    %c0_124 = arith.constant 0 : index
    %c0_125 = arith.constant 0 : index
    %431 = vector.load %arg8[%430, %c0_124, %c0_125] : memref<8x8x128xbf16, #tpu.memory_space<vmem>>, vector<1x8x128xbf16>
    %432 = vector.shape_cast %431 : vector<1x8x128xbf16> to vector<8x128xbf16>
    %433 = vector.shape_cast %429 : vector<8x128xbf16> to vector<1x8x128xbf16>
    tpu.vector_store %arg8[%430, %c0_124, %c0_125], %433 {strides = array<i32>} : memref<8x8x128xbf16, #tpu.memory_space<vmem>>, vector<1x8x128xbf16>,
    %434 = arith.addf %381, %428 : vector<8x128xf32>
    %c8_i32_126 = arith.constant 8 : i32
    %c0_127 = arith.constant 0 : index
    %c0_128 = arith.constant 0 : index
    %435 = vector.load %arg10[%c0_127, %c0_128] : memref<8x128xf32, #tpu.memory_space<vmem>>, vector<8x128xf32>
    tpu.vector_store %arg10[%c0_127, %c0_128], %421 {strides = array<i32>} : memref<8x128xf32, #tpu.memory_space<vmem>>, vector<8x128xf32>,
    %c0_129 = arith.constant 0 : index
    %c0_130 = arith.constant 0 : index
    %436 = vector.load %arg11[%c0_129, %c0_130] : memref<8x128xf32, #tpu.memory_space<vmem>>, vector<8x128xf32>
    tpu.vector_store %arg11[%c0_129, %c0_130], %434 {strides = array<i32>} : memref<8x128xf32, #tpu.memory_space<vmem>>, vector<8x128xf32>,
    %c0_i32_131 = arith.constant 0 : i32
    %437 = arith.cmpi eq, %arg1, %c0_i32_131 : i32
    %438 = arith.extui %437 : i1 to i32
    %c0_i32_132 = arith.constant 0 : i32
    %439 = arith.cmpi ne, %438, %c0_i32_132 : i32
    scf.if %439 {
      %440 = arith.sitofp %3 : vector<8x1xi32> to vector<8x1xf32>
      %441 = tpu.reciprocal %440 {approx = true} : vector<8x1xf32> -> vector<8x1xf32>
      %442 = vector.broadcast %441 : vector<8x1xf32> to vector<8x128xf32>
      %443 = arith.mulf %434, %442 : vector<8x128xf32>
      %c0_133 = arith.constant 0 : index
      %c0_134 = arith.constant 0 : index
      %444 = vector.load %arg9[%c0_133, %c0_134] : memref<8x128xf32, #tpu.memory_space<vmem>>, vector<8x128xf32>
      tpu.vector_store %arg9[%c0_133, %c0_134], %443 {strides = array<i32>} : memref<8x128xf32, #tpu.memory_space<vmem>>, vector<8x128xf32>,
    } else {
    }
    return
  }
  func.func @transform_0(%arg0: i32, %arg1: i32) -> (i32, i32) {
    %c0_i32 = arith.constant 0 : i32
    %c0_i32_0 = arith.constant 0 : i32
    return %arg0, %c0_i32 : i32, i32
  }
  func.func @transform_1(%arg0: i32, %arg1: i32) -> (i32, i32, i32) {
    %c0_i32 = arith.constant 0 : i32
    %c0_i32_0 = arith.constant 0 : i32
    return %arg1, %arg0, %c0_i32 : i32, i32, i32
  }
  func.func @transform_2(%arg0: i32, %arg1: i32) -> (i32, i32) {
    %c0_i32 = arith.constant 0 : i32
    %c0_i32_0 = arith.constant 0 : i32
    %c0_i32_1 = arith.constant 0 : i32
    return %c0_i32, %c0_i32_0 : i32, i32
  }
  func.func @transform_3(%arg0: i32, %arg1: i32) -> (i32, i32) {
    %c0_i32 = arith.constant 0 : i32
    %c0_i32_0 = arith.constant 0 : i32
    %c0_i32_1 = arith.constant 0 : i32
    return %c0_i32, %c0_i32_0 : i32, i32
  }
  func.func @transform_4(%arg0: i32, %arg1: i32) -> (i32, i32) {
    %c0_i32 = arith.constant 0 : i32
    %c0_i32_0 = arith.constant 0 : i32
    %c0_i32_1 = arith.constant 0 : i32
    return %c0_i32, %c0_i32_0 : i32, i32
  }
  func.func @transform_5(%arg0: i32, %arg1: i32) -> (i32, i32) {
    %c0_i32 = arith.constant 0 : i32
    %c0_i32_0 = arith.constant 0 : i32
    %c0_i32_1 = arith.constant 0 : i32
    return %c0_i32, %c0_i32_0 : i32, i32
  }
  func.func @transform_6(%arg0: i32, %arg1: i32) -> (i32, i32, i32) {
    %c0_i32 = arith.constant 0 : i32
    %c0_i32_0 = arith.constant 0 : i32
    return %arg1, %arg0, %c0_i32 : i32, i32, i32
  }
  func.func @transform_7(%arg0: i32, %arg1: i32) -> (i32, i32) {
    %c0_i32 = arith.constant 0 : i32
    %c0_i32_0 = arith.constant 0 : i32
    return %arg0, %c0_i32 : i32, i32
  }
}

</mosaic_0001>

<llo_original>
// kernel: tpu_custom_call.1
$region0: #{tpu_custom_call.1}
  #allocation0 [shape = 'u32[]', space=smem, size = 0x4, offset = 0x4, fixed_abs, tag = 'smem constant byte address 0x4 - core index']
  #allocation1 [shape = 'u32[144,128]{1,0:T(1,128)}', space=vmem, size = 0x12000, scoped, tag = 'internal scratch']
  #allocation2 [shape = 'f32[8,128]{1,0:T(8,128)}', space=vmem, size = 0x1000, scoped, tag = 'scratch operand']
  #allocation3 [shape = 'f32[8,128]{1,0:T(8,128)}', space=vmem, size = 0x1000, scoped, tag = 'scratch operand']
  %s0 = inlined_call_operand.vmem [shape: s32[8,1], index: 0, kind: input, shape index: {}]
  %s1 = inlined_call_operand.hbm [shape: bf16[8,8,128], index: 1, kind: input, shape index: {}]
  %s2 = inlined_call_operand.hbm [shape: bf16[128,384], index: 2, kind: input, shape index: {}]
  %s3 = inlined_call_operand.hbm [shape: bf16[128,384], index: 3, kind: input, shape index: {}]
  %s4 = inlined_call_operand.vmem [shape: f32[1,384], index: 4, kind: input, shape index: {}]
  %s5 = inlined_call_operand.vmem [shape: f32[1,384], index: 5, kind: input, shape index: {}]
  %s6 = inlined_call_operand.hbm [shape: bf16[8,8,128], index: 6, kind: output, shape index: {0}]
  %s7 = inlined_call_operand.hbm [shape: f32[8,128], index: 7, kind: output, shape index: {1}]
  %8 = xla_tuple %s6, %s7
  %s9 = sld [smem:[#allocation0]]
  $region62: #{tpu_custom_call.1} parent=0
    _
  %s11 = ssub.s32 1, %s9
  %s12 = scalar_select 0, %s11, %s9
  $region1: #{tpu_custom_call.1} parent=0
    #allocation4 [shape = 'u8[16384]{0}', space=vmem, size = 0x4000, scoped, tag = 'input window, operand 1, single buffered']
    #allocation5 [shape = 's32[1]{0}', space=sflag, size = 0x4, scoped, tag = 'scoped memory for tpu_custom_call.1']
    #allocation6 [shape = 's32[1]{0}', space=sflag, size = 0x4, scoped, tag = 'scoped memory for tpu_custom_call.1']
    #allocation7 [shape = 'u8[98304]{0}', space=vmem, size = 0x18000, scoped, tag = 'input window, operand 2, single buffered']
    #allocation8 [shape = 's32[1]{0}', space=sflag, size = 0x4, scoped, tag = 'scoped memory for tpu_custom_call.1']
    #allocation9 [shape = 'u8[98304]{0}', space=vmem, size = 0x18000, scoped, tag = 'input window, operand 3, single buffered']
    #allocation10 [shape = 'u8[16384]{0}', space=vmem, size = 0x4000, scoped, tag = 'output window, operand 0, single buffered']
    #allocation11 [shape = 'u8[4096]{0}', space=vmem, size = 0x1000, scoped, tag = 'output window, operand 1, single buffered']
    #allocation12 [shape = 's32[1]{0}', space=sflag, size = 0x4, scoped, tag = 'scoped memory for tpu_custom_call.1']
    %13 = vsyncpa [#allocation5], 0
    %14 = vsyncpa [#allocation8], 0
    %15 = vsyncpa [#allocation6], 0
    %16 = vsyncpa [#allocation12], 0
    // Predicated region
    $region2: #{tpu_custom_call.1} parent=1 // pred_check
      _
    $region3: #{tpu_custom_call.1} parent=1 // pred_check_branch
      %18 = sbr.rel (0) target = $region5
    $region4: #{tpu_custom_call.1} parent=1 // pred_region
      _
    $region5: #{tpu_custom_call.1} parent=1 // pred_fallthru
      _
    // Predicated region
    $region6: #{tpu_custom_call.1} parent=1 // pred_check
      _
    $region7: #{tpu_custom_call.1} parent=1 // pred_check_branch
      %20 = sbr.rel (0) target = $region9
    $region8: #{tpu_custom_call.1} parent=1 // pred_region
      %s22 = ssub.s32 512, 512
      %23 = vsyncadd [#allocation5], %s22
      %s24 = sshll.u32 [#allocation4], 4
      %s25 = int_to_ptr.vmem [resolvable:$true] %s24
      %30 = dma.hbm_to_vmem [thread:$0]  %s1, 512, %s25, [#allocation5], 64, 64, 4
    $region9: #{tpu_custom_call.1} parent=1 // pred_fallthru
      _
    // Predicated region
    $region10: #{tpu_custom_call.1} parent=1 // pred_check
      _
    $region11: #{tpu_custom_call.1} parent=1 // pred_check_branch
      %32 = sbr.rel (0) target = $region13
    $region12: #{tpu_custom_call.1} parent=1 // pred_region
      %s34 = ssub.s32 3072, 3072
      %35 = vsyncadd [#allocation8], %s34
      %s36 = sshll.u32 [#allocation7], 4
      %s37 = int_to_ptr.vmem [resolvable:$true] %s36
      %42 = dma.hbm_to_vmem [thread:$0]  %s2, 3072, %s37, [#allocation8], 192, 192, 12
    $region13: #{tpu_custom_call.1} parent=1 // pred_fallthru
      _
    // Predicated region
    $region14: #{tpu_custom_call.1} parent=1 // pred_check
      _
    $region15: #{tpu_custom_call.1} parent=1 // pred_check_branch
      %44 = sbr.rel (0) target = $region17
    $region16: #{tpu_custom_call.1} parent=1 // pred_region
      %s46 = ssub.s32 3072, 3072
      %47 = vsyncadd [#allocation8], %s46
      %s48 = sshll.u32 [#allocation9], 4
      %s49 = int_to_ptr.vmem [resolvable:$true] %s48
      %54 = dma.hbm_to_vmem [thread:$0]  %s3, 3072, %s49, [#allocation8], 192, 192, 12
    $region17: #{tpu_custom_call.1} parent=1 // pred_fallthru
      _
    // Predicated region
    $region18: #{tpu_custom_call.1} parent=1 // pred_check
      _
    $region19: #{tpu_custom_call.1} parent=1 // pred_check_branch
      %56 = sbr.rel (0) target = $region21
    $region20: #{tpu_custom_call.1} parent=1 // pred_region
      _
    $region21: #{tpu_custom_call.1} parent=1 // pred_fallthru
      _
    // Predicated region
    $region22: #{tpu_custom_call.1} parent=1 // pred_check
      _
    $region23: #{tpu_custom_call.1} parent=1 // pred_check_branch
      %58 = sbr.rel (0) target = $region25
    $region24: #{tpu_custom_call.1} parent=1 // pred_region
      _
    $region25: #{tpu_custom_call.1} parent=1 // pred_fallthru
      _
    // Predicated region
    $region26: #{tpu_custom_call.1} parent=1 // pred_check
      _
    $region27: #{tpu_custom_call.1} parent=1 // pred_check_branch
      %60 = sbr.rel (0) target = $region29
    $region28: #{tpu_custom_call.1} parent=1 // pred_region
      %61 = dma.done [#allocation5], 512
    $region29: #{tpu_custom_call.1} parent=1 // pred_fallthru
      _
    // Predicated region
    $region30: #{tpu_custom_call.1} parent=1 // pred_check
      _
    $region31: #{tpu_custom_call.1} parent=1 // pred_check_branch
      %63 = sbr.rel (0) target = $region33
    $region32: #{tpu_custom_call.1} parent=1 // pred_region
      %64 = dma.done [#allocation8], 3072
    $region33: #{tpu_custom_call.1} parent=1 // pred_fallthru
      _
    // Predicated region
    $region34: #{tpu_custom_call.1} parent=1 // pred_check
      _
    $region35: #{tpu_custom_call.1} parent=1 // pred_check_branch
      %66 = sbr.rel (0) target = $region37
    $region36: #{tpu_custom_call.1} parent=1 // pred_region
      %67 = dma.done [#allocation8], 3072
    $region37: #{tpu_custom_call.1} parent=1 // pred_fallthru
      _
    %p69 = scmp.eq.s32.totalorder 0, 0
    // Predicated region
    $region38: #{tpu_custom_call.1} parent=1 // pred_check
      %p70 = pneg %p69
    $region39: #{tpu_custom_call.1} parent=1 // pred_check_branch
      %72 = sbr.rel (%p70) target = $region41
    $region40: #{tpu_custom_call.1} parent=1 // pred_region
      %73 = vst [vmem:[#allocation2] sm:$0xff] 0.0
      %74 = vst [vmem:[#allocation3] sm:$0xff] 0.0
    $region41: #{tpu_custom_call.1} parent=1 // pred_fallthru
      _
    %v75 = vld [vmem:[%s0] sm:$0xff]
    %s76 = smul.u32 0, 8
    %v77 = vld [vmem:[#allocation7] sm:$0xff]
    %v78 = vld [vmem:[#allocation7 + $0x8] sm:$0xf]
    %v79 = vld [vmem:[#allocation7 + $0xc] sm:$0xff]
    %v80 = vld [vmem:[#allocation7 + $0x14] sm:$0xf]
    %v81 = vld [vmem:[#allocation7 + $0x18] sm:$0xff]
    %v82 = vld [vmem:[#allocation7 + $0x20] sm:$0xf]
    %v83 = vld [vmem:[#allocation7 + $0x24] sm:$0xff]
    %v84 = vld [vmem:[#allocation7 + $0x2c] sm:$0xf]
    %v85 = vld [vmem:[#allocation7 + $0x30] sm:$0xff]
    %v86 = vld [vmem:[#allocation7 + $0x38] sm:$0xf]
    %v87 = vld [vmem:[#allocation7 + $0x3c] sm:$0xff]
    %v88 = vld [vmem:[#allocation7 + $0x44] sm:$0xf]
    %v89 = vld [vmem:[#allocation7 + $0x48] sm:$0xff]
    %v90 = vld [vmem:[#allocation7 + $0x50] sm:$0xf]
    %v91 = vld [vmem:[#allocation7 + $0x54] sm:$0xff]
    %v92 = vld [vmem:[#allocation7 + $0x5c] sm:$0xf]
    %v93 = vld [vmem:[#allocation7 + $0x60] sm:$0xff]
    %v94 = vld [vmem:[#allocation7 + $0x68] sm:$0xf]
    %v95 = vld [vmem:[#allocation7 + $0x6c] sm:$0xff]
    %v96 = vld [vmem:[#allocation7 + $0x74] sm:$0xf]
    %v97 = vld [vmem:[#allocation7 + $0x78] sm:$0xff]
    %v98 = vld [vmem:[#allocation7 + $0x80] sm:$0xf]
    %v99 = vld [vmem:[#allocation7 + $0x84] sm:$0xff]
    %v100 = vld [vmem:[#allocation7 + $0x8c] sm:$0xf]
    %v101 = vld [vmem:[#allocation7 + $0x90] sm:$0xff]
    %v102 = vld [vmem:[#allocation7 + $0x98] sm:$0xf]
    %v103 = vld [vmem:[#allocation7 + $0x9c] sm:$0xff]
    %v104 = vld [vmem:[#allocation7 + $0xa4] sm:$0xf]
    %v105 = vld [vmem:[#allocation7 + $0xa8] sm:$0xff]
    %v106 = vld [vmem:[#allocation7 + $0xb0] sm:$0xf]
    %v107 = vld [vmem:[#allocation7 + $0xb4] sm:$0xff]
    %v108 = vld [vmem:[#allocation7 + $0xbc] sm:$0xf]
    %v109 = vld [vmem:[#allocation9] sm:$0xff]
    %v110 = vld [vmem:[#allocation9 + $0x8] sm:$0xf]
    %v111 = vld [vmem:[#allocation9 + $0xc] sm:$0xff]
    %v112 = vld [vmem:[#allocation9 + $0x14] sm:$0xf]
    %v113 = vld [vmem:[#allocation9 + $0x18] sm:$0xff]
    %v114 = vld [vmem:[#allocation9 + $0x20] sm:$0xf]
    %v115 = vld [vmem:[#allocation9 + $0x24] sm:$0xff]
    %v116 = vld [vmem:[#allocation9 + $0x2c] sm:$0xf]
    %v117 = vld [vmem:[#allocation9 + $0x30] sm:$0xff]
    %v118 = vld [vmem:[#allocation9 + $0x38] sm:$0xf]
    %v119 = vld [vmem:[#allocation9 + $0x3c] sm:$0xff]
    %v120 = vld [vmem:[#allocation9 + $0x44] sm:$0xf]
    %v121 = vld [vmem:[#allocation9 + $0x48] sm:$0xff]
    %v122 = vld [vmem:[#allocation9 + $0x50] sm:$0xf]
    %v123 = vld [vmem:[#allocation9 + $0x54] sm:$0xff]
    %v124 = vld [vmem:[#allocation9 + $0x5c] sm:$0xf]
    %v125 = vld [vmem:[#allocation9 + $0x60] sm:$0xff]
    %v126 = vld [vmem:[#allocation9 + $0x68] sm:$0xf]
    %v127 = vld [vmem:[#allocation9 + $0x6c] sm:$0xff]
    %v128 = vld [vmem:[#allocation9 + $0x74] sm:$0xf]
    %v129 = vld [vmem:[#allocation9 + $0x78] sm:$0xff]
    %v130 = vld [vmem:[#allocation9 + $0x80] sm:$0xf]
    %v131 = vld [vmem:[#allocation9 + $0x84] sm:$0xff]
    %v132 = vld [vmem:[#allocation9 + $0x8c] sm:$0xf]
    %v133 = vld [vmem:[#allocation9 + $0x90] sm:$0xff]
    %v134 = vld [vmem:[#allocation9 + $0x98] sm:$0xf]
    %v135 = vld [vmem:[#allocation9 + $0x9c] sm:$0xff]
    %v136 = vld [vmem:[#allocation9 + $0xa4] sm:$0xf]
    %v137 = vld [vmem:[#allocation9 + $0xa8] sm:$0xff]
    %v138 = vld [vmem:[#allocation9 + $0xb0] sm:$0xf]
    %v139 = vld [vmem:[#allocation9 + $0xb4] sm:$0xff]
    %v140 = vld [vmem:[#allocation9 + $0xbc] sm:$0xf]
    %v141 = vld [vmem:[%s4] sm:$0x7]
    %v142 = vld [vmem:[%s5] sm:$0x7]
    %v143 = vld [vmem:[#allocation2] sm:$0xff]
    %v144 = vld [vmem:[#allocation3] sm:$0xff]
    %v145 = vld [vmem:[#allocation4] sm:$0xf]
    %v147 = vlaneseq
    %v148 = vshrl.u32 %v147, 7
    %v149 = vsub.s32 0, %v148
    %v150 = vrot.slane %v141, %v149
    %v151 = vlaneseq
    %v152 = vshrl.u32 %v151, 7
    %v153 = vsub.s32 1, %v152
    %v154 = vrot.slane %v141, %v153
    %v155 = vlaneseq
    %v156 = vshrl.u32 %v155, 7
    %v157 = vsub.s32 2, %v156
    %v158 = vrot.slane %v141, %v157
    %v194 = vunpack.c.l.b16 %v77
    %v195 = vunpack.c.h.b16 %v77
    %v196 = vunpack.c.l.b16 %v78
    %v197 = vunpack.c.l.b16 %v79
    %v198 = vunpack.c.h.b16 %v79
    %v199 = vunpack.c.l.b16 %v80
    %v200 = vunpack.c.l.b16 %v81
    %v201 = vunpack.c.h.b16 %v81
    %v202 = vunpack.c.l.b16 %v82
    %v203 = vunpack.c.l.b16 %v83
    %v204 = vunpack.c.h.b16 %v83
    %v205 = vunpack.c.l.b16 %v84
    %v206 = vunpack.c.l.b16 %v85
    %v207 = vunpack.c.h.b16 %v85
    %v208 = vunpack.c.l.b16 %v86
    %v209 = vunpack.c.l.b16 %v87
    %v210 = vunpack.c.h.b16 %v87
    %v211 = vunpack.c.l.b16 %v88
    %v212 = vunpack.c.l.b16 %v89
    %v213 = vunpack.c.h.b16 %v89
    %v214 = vunpack.c.l.b16 %v90
    %v215 = vunpack.c.l.b16 %v91
    %v216 = vunpack.c.h.b16 %v91
    %v217 = vunpack.c.l.b16 %v92
    %v218 = vunpack.c.l.b16 %v93
    %v219 = vunpack.c.h.b16 %v93
    %v220 = vunpack.c.l.b16 %v94
    %v221 = vunpack.c.l.b16 %v95
    %v222 = vunpack.c.h.b16 %v95
    %v223 = vunpack.c.l.b16 %v96
    %v224 = vunpack.c.l.b16 %v97
    %v225 = vunpack.c.h.b16 %v97
    %v226 = vunpack.c.l.b16 %v98
    %v227 = vunpack.c.l.b16 %v99
    %v228 = vunpack.c.h.b16 %v99
    %v229 = vunpack.c.l.b16 %v100
    %v230 = vunpack.c.l.b16 %v101
    %v231 = vunpack.c.h.b16 %v101
    %v232 = vunpack.c.l.b16 %v102
    %v233 = vunpack.c.l.b16 %v103
    %v234 = vunpack.c.h.b16 %v103
    %v235 = vunpack.c.l.b16 %v104
    %v236 = vunpack.c.l.b16 %v105
    %v237 = vunpack.c.h.b16 %v105
    %v238 = vunpack.c.l.b16 %v106
    %v239 = vunpack.c.l.b16 %v107
    %v240 = vunpack.c.h.b16 %v107
    %v241 = vunpack.c.l.b16 %v108
    %v242 = vpack.c.b16 %v197, %v194
    %v243 = vpack.c.b16 %v198, %v195
    %v244 = vpack.c.b16 %v199, %v196
    %v245 = vpack.c.b16 %v203, %v200
    %v246 = vpack.c.b16 %v204, %v201
    %v247 = vpack.c.b16 %v205, %v202
    %v248 = vpack.c.b16 %v209, %v206
    %v249 = vpack.c.b16 %v210, %v207
    %v250 = vpack.c.b16 %v211, %v208
    %v251 = vpack.c.b16 %v215, %v212
    %v252 = vpack.c.b16 %v216, %v213
    %v253 = vpack.c.b16 %v217, %v214
    %v254 = vpack.c.b16 %v221, %v218
    %v255 = vpack.c.b16 %v222, %v219
    %v256 = vpack.c.b16 %v223, %v220
    %v257 = vpack.c.b16 %v227, %v224
    %v258 = vpack.c.b16 %v228, %v225
    %v259 = vpack.c.b16 %v229, %v226
    %v260 = vpack.c.b16 %v233, %v230
    %v261 = vpack.c.b16 %v234, %v231
    %v262 = vpack.c.b16 %v235, %v232
    %v263 = vpack.c.b16 %v239, %v236
    %v264 = vpack.c.b16 %v240, %v237
    %v265 = vpack.c.b16 %v241, %v238
    %290 = vmatprep.subr.bf16.mxu0 %v264
    %291 = vmatpush1.bf16.msra.mxu0 %v263
    %292 = vmatprep.subr.bf16.mxu0 %v261
    %293 = vmatpush1.bf16.msra.mxu0 %v260
    %294 = vmatprep.subr.bf16.mxu0 %v258
    %295 = vmatpush1.bf16.msra.mxu0 %v257
    %296 = vmatprep.subr.bf16.mxu0 %v255
    %297 = vmatpush1.bf16.msra.mxu0 %v254
    %298 = vmatprep.subr.bf16.mxu0 %v252
    %299 = vmatpush1.bf16.msra.mxu0 %v251
    %300 = vmatprep.subr.bf16.mxu0 %v249
    %301 = vmatpush1.bf16.msra.mxu0 %v248
    %302 = vmatprep.subr.bf16.mxu0 %v246
    %303 = vmatpush1.bf16.msra.mxu0 %v245
    %304 = vmatprep.subr.bf16.mxu0 %v243
    %305 = vmatpush1.bf16.msra.mxu0 %v242
    %306 = vmatprep.subr.bf16.mxu0 0
    %307 = vmatpush2.bf16.msra.mxu0 0
    %308 = vmatprep.subr.bf16.mxu0 0
    %309 = vmatpush2.bf16.msra.mxu0 0
    %310 = vmatprep.subr.bf16.mxu0 0
    %311 = vmatpush2.bf16.msra.mxu0 0
    %312 = vmatprep.subr.bf16.mxu0 0
    %313 = vmatpush2.bf16.msra.mxu0 0
    %314 = vmatprep.subr.bf16.mxu0 0
    %315 = vmatpush2.bf16.msra.mxu0 0
    %316 = vmatprep.subr.bf16.mxu0 0
    %317 = vmatpush2.bf16.msra.mxu0 0
    %318 = vmatprep.subr.bf16.mxu0 0
    %319 = vmatpush2.bf16.msra.mxu0 0
    %320 = vmatprep.subr.bf16.mxu0 0
    %321 = vmatpush2.bf16.msra.mxu0 0
    %322 = vmatprep.mubr.bf16.mxu0 0
    %323 = vmatmul.mubr.bf16.gmra.mxu0 %v145
    %v324 = vpop.f32.mrf.mxu0
    %v325 = vadd.f32 %v150, %v324
    %v326 = vpop.f32.mrf.mxu0
    %v327 = vadd.f32 %v154, %v326
    %v328 = vpop.f32.mrf.mxu0
    %v329 = vpop.f32.mrf.mxu0
    %330 = vdwg.mxu0
    %331 = vmatprep.subr.bf16.mxu0 0
    %332 = vmatpush1.bf16.msra.mxu0 %v265
    %333 = vmatprep.subr.bf16.mxu0 0
    %334 = vmatpush1.bf16.msra.mxu0 %v262
    %335 = vmatprep.subr.bf16.mxu0 0
    %336 = vmatpush1.bf16.msra.mxu0 %v259
    %337 = vmatprep.subr.bf16.mxu0 0
    %338 = vmatpush1.bf16.msra.mxu0 %v256
    %339 = vmatprep.subr.bf16.mxu0 0
    %340 = vmatpush1.bf16.msra.mxu0 %v253
    %341 = vmatprep.subr.bf16.mxu0 0
    %342 = vmatpush1.bf16.msra.mxu0 %v250
    %343 = vmatprep.subr.bf16.mxu0 0
    %344 = vmatpush1.bf16.msra.mxu0 %v247
    %345 = vmatprep.subr.bf16.mxu0 0
    %346 = vmatpush1.bf16.msra.mxu0 %v244
    %347 = vmatprep.subr.bf16.mxu0 0
    %348 = vmatpush2.bf16.msra.mxu0 0
    %349 = vmatprep.subr.bf16.mxu0 0
    %350 = vmatpush2.bf16.msra.mxu0 0
    %351 = vmatprep.subr.bf16.mxu0 0
    %352 = vmatpush2.bf16.msra.mxu0 0
    %353 = vmatprep.subr.bf16.mxu0 0
    %354 = vmatpush2.bf16.msra.mxu0 0
    %355 = vmatprep.subr.bf16.mxu0 0
    %356 = vmatpush2.bf16.msra.mxu0 0
    %357 = vmatprep.subr.bf16.mxu0 0
    %358 = vmatpush2.bf16.msra.mxu0 0
    %359 = vmatprep.subr.bf16.mxu0 0
    %360 = vmatpush2.bf16.msra.mxu0 0
    %361 = vmatprep.subr.bf16.mxu0 0
    %362 = vmatpush2.bf16.msra.mxu0 0
    %363 = vmatprep.mubr.bf16.mxu0 0
    %364 = vmatmul.mubr.bf16.gmra.mxu0 %v145
    %v365 = vpop.f32.mrf.mxu0
    %v366 = vadd.f32 %v158, %v365
    %v367 = vpop.f32.mrf.mxu0
    %v368 = vpop.f32.mrf.mxu0
    %v369 = vpop.f32.mrf.mxu0
    %370 = vdwg.mxu0
    %v371 = vpack.c.bf16 %v143, %v143
    %v373 = vlaneseq
    %v374 = vshrl.u32 %v373, 7
    %v375 = vsub.s32 0, %v374
    %v376 = vrot.slane %v142, %v375
    %v377 = vlaneseq
    %v378 = vshrl.u32 %v377, 7
    %v379 = vsub.s32 1, %v378
    %v380 = vrot.slane %v142, %v379
    %v381 = vlaneseq
    %v382 = vshrl.u32 %v381, 7
    %v383 = vsub.s32 2, %v382
    %v384 = vrot.slane %v142, %v383
    %v420 = vunpack.c.l.b16 %v109
    %v421 = vunpack.c.h.b16 %v109
    %v422 = vunpack.c.l.b16 %v110
    %v423 = vunpack.c.l.b16 %v111
    %v424 = vunpack.c.h.b16 %v111
    %v425 = vunpack.c.l.b16 %v112
    %v426 = vunpack.c.l.b16 %v113
    %v427 = vunpack.c.h.b16 %v113
    %v428 = vunpack.c.l.b16 %v114
    %v429 = vunpack.c.l.b16 %v115
    %v430 = vunpack.c.h.b16 %v115
    %v431 = vunpack.c.l.b16 %v116
    %v432 = vunpack.c.l.b16 %v117
    %v433 = vunpack.c.h.b16 %v117
    %v434 = vunpack.c.l.b16 %v118
    %v435 = vunpack.c.l.b16 %v119
    %v436 = vunpack.c.h.b16 %v119
    %v437 = vunpack.c.l.b16 %v120
    %v438 = vunpack.c.l.b16 %v121
    %v439 = vunpack.c.h.b16 %v121
    %v440 = vunpack.c.l.b16 %v122
    %v441 = vunpack.c.l.b16 %v123
    %v442 = vunpack.c.h.b16 %v123
    %v443 = vunpack.c.l.b16 %v124
    %v444 = vunpack.c.l.b16 %v125
    %v445 = vunpack.c.h.b16 %v125
    %v446 = vunpack.c.l.b16 %v126
    %v447 = vunpack.c.l.b16 %v127
    %v448 = vunpack.c.h.b16 %v127
    %v449 = vunpack.c.l.b16 %v128
    %v450 = vunpack.c.l.b16 %v129
    %v451 = vunpack.c.h.b16 %v129
    %v452 = vunpack.c.l.b16 %v130
    %v453 = vunpack.c.l.b16 %v131
    %v454 = vunpack.c.h.b16 %v131
    %v455 = vunpack.c.l.b16 %v132
    %v456 = vunpack.c.l.b16 %v133
    %v457 = vunpack.c.h.b16 %v133
    %v458 = vunpack.c.l.b16 %v134
    %v459 = vunpack.c.l.b16 %v135
    %v460 = vunpack.c.h.b16 %v135
    %v461 = vunpack.c.l.b16 %v136
    %v462 = vunpack.c.l.b16 %v137
    %v463 = vunpack.c.h.b16 %v137
    %v464 = vunpack.c.l.b16 %v138
    %v465 = vunpack.c.l.b16 %v139
    %v466 = vunpack.c.h.b16 %v139
    %v467 = vunpack.c.l.b16 %v140
    %v468 = vpack.c.b16 %v423, %v420
    %v469 = vpack.c.b16 %v424, %v421
    %v470 = vpack.c.b16 %v425, %v422
    %v471 = vpack.c.b16 %v429, %v426
    %v472 = vpack.c.b16 %v430, %v427
    %v473 = vpack.c.b16 %v431, %v428
    %v474 = vpack.c.b16 %v435, %v432
    %v475 = vpack.c.b16 %v436, %v433
    %v476 = vpack.c.b16 %v437, %v434
    %v477 = vpack.c.b16 %v441, %v438
    %v478 = vpack.c.b16 %v442, %v439
    %v479 = vpack.c.b16 %v443, %v440
    %v480 = vpack.c.b16 %v447, %v444
    %v481 = vpack.c.b16 %v448, %v445
    %v482 = vpack.c.b16 %v449, %v446
    %v483 = vpack.c.b16 %v453, %v450
    %v484 = vpack.c.b16 %v454, %v451
    %v485 = vpack.c.b16 %v455, %v452
    %v486 = vpack.c.b16 %v459, %v456
    %v487 = vpack.c.b16 %v460, %v457
    %v488 = vpack.c.b16 %v461, %v458
    %v489 = vpack.c.b16 %v465, %v462
    %v490 = vpack.c.b16 %v466, %v463
    %v491 = vpack.c.b16 %v467, %v464
    %516 = vmatprep.subr.bf16.mxu0 %v490
    %517 = vmatpush1.bf16.msra.mxu0 %v489
    %518 = vmatprep.subr.bf16.mxu0 %v487
    %519 = vmatpush1.bf16.msra.mxu0 %v486
    %520 = vmatprep.subr.bf16.mxu0 %v484
    %521 = vmatpush1.bf16.msra.mxu0 %v483
    %522 = vmatprep.subr.bf16.mxu0 %v481
    %523 = vmatpush1.bf16.msra.mxu0 %v480
    %524 = vmatprep.subr.bf16.mxu0 %v478
    %525 = vmatpush1.bf16.msra.mxu0 %v477
    %526 = vmatprep.subr.bf16.mxu0 %v475
    %527 = vmatpush1.bf16.msra.mxu0 %v474
    %528 = vmatprep.subr.bf16.mxu0 %v472
    %529 = vmatpush1.bf16.msra.mxu0 %v471
    %530 = vmatprep.subr.bf16.mxu0 %v469
    %531 = vmatpush1.bf16.msra.mxu0 %v468
    %532 = vmatprep.subr.bf16.mxu0 0
    %533 = vmatpush2.bf16.msra.mxu0 0
    %534 = vmatprep.subr.bf16.mxu0 0
    %535 = vmatpush2.bf16.msra.mxu0 0
    %536 = vmatprep.subr.bf16.mxu0 0
    %537 = vmatpush2.bf16.msra.mxu0 0
    %538 = vmatprep.subr.bf16.mxu0 0
    %539 = vmatpush2.bf16.msra.mxu0 0
    %540 = vmatprep.subr.bf16.mxu0 0
    %541 = vmatpush2.bf16.msra.mxu0 0
    %542 = vmatprep.subr.bf16.mxu0 0
    %543 = vmatpush2.bf16.msra.mxu0 0
    %544 = vmatprep.subr.bf16.mxu0 0
    %545 = vmatpush2.bf16.msra.mxu0 0
    %546 = vmatprep.subr.bf16.mxu0 0
    %547 = vmatpush2.bf16.msra.mxu0 0
    %548 = vmatprep.mubr.bf16.mxu0 0
    %549 = vmatmul.mubr.bf16.gmra.mxu0 %v371
    %v550 = vpop.f32.mrf.mxu0
    %v551 = vadd.f32 %v376, %v550
    %v552 = vpop.f32.mrf.mxu0
    %v553 = vadd.f32 %v380, %v552
    %v554 = vpop.f32.mrf.mxu0
    %v555 = vpop.f32.mrf.mxu0
    %556 = vdwg.mxu0
    %557 = vmatprep.subr.bf16.mxu0 0
    %558 = vmatpush1.bf16.msra.mxu0 %v491
    %559 = vmatprep.subr.bf16.mxu0 0
    %560 = vmatpush1.bf16.msra.mxu0 %v488
    %561 = vmatprep.subr.bf16.mxu0 0
    %562 = vmatpush1.bf16.msra.mxu0 %v485
    %563 = vmatprep.subr.bf16.mxu0 0
    %564 = vmatpush1.bf16.msra.mxu0 %v482
    %565 = vmatprep.subr.bf16.mxu0 0
    %566 = vmatpush1.bf16.msra.mxu0 %v479
    %567 = vmatprep.subr.bf16.mxu0 0
    %568 = vmatpush1.bf16.msra.mxu0 %v476
    %569 = vmatprep.subr.bf16.mxu0 0
    %570 = vmatpush1.bf16.msra.mxu0 %v473
    %571 = vmatprep.subr.bf16.mxu0 0
    %572 = vmatpush1.bf16.msra.mxu0 %v470
    %573 = vmatprep.subr.bf16.mxu0 0
    %574 = vmatpush2.bf16.msra.mxu0 0
    %575 = vmatprep.subr.bf16.mxu0 0
    %576 = vmatpush2.bf16.msra.mxu0 0
    %577 = vmatprep.subr.bf16.mxu0 0
    %578 = vmatpush2.bf16.msra.mxu0 0
    %579 = vmatprep.subr.bf16.mxu0 0
    %580 = vmatpush2.bf16.msra.mxu0 0
    %581 = vmatprep.subr.bf16.mxu0 0
    %582 = vmatpush2.bf16.msra.mxu0 0
    %583 = vmatprep.subr.bf16.mxu0 0
    %584 = vmatpush2.bf16.msra.mxu0 0
    %585 = vmatprep.subr.bf16.mxu0 0
    %586 = vmatpush2.bf16.msra.mxu0 0
    %587 = vmatprep.subr.bf16.mxu0 0
    %588 = vmatpush2.bf16.msra.mxu0 0
    %589 = vmatprep.mubr.bf16.mxu0 0
    %590 = vmatmul.mubr.bf16.gmra.mxu0 %v371
    %v591 = vpop.f32.mrf.mxu0
    %v592 = vadd.f32 %v384, %v591
    %v593 = vpop.f32.mrf.mxu0
    %v594 = vpop.f32.mrf.mxu0
    %v595 = vpop.f32.mrf.mxu0
    %596 = vdwg.mxu0
    %v597 = vadd.f32 %v325, %v551
    %v598 = vmul.f32 %v597, 0.5
    %v599 = vtanh.pop %v598
    %v600 = vmul.f32 %v599, 0.5
    %v601 = vadd.f32 %v600, 0.5
    %v602 = vadd.f32 %v327, %v553
    %v603 = vmul.f32 %v602, 0.5
    %v604 = vtanh.pop %v603
    %v605 = vmul.f32 %v604, 0.5
    %v606 = vadd.f32 %v605, 0.5
    %v607 = vmul.f32 %v601, %v592
    %v608 = vadd.f32 %v366, %v607
    %v609 = vtanh.pop %v608
    %v610 = vsub.f32 1.0, %v606
    %v611 = vmul.f32 %v610, %v609
    %v612 = vmul.f32 %v606, %v143
    %v613 = vadd.f32 %v611, %v612
    %v614 = vstv %s76
    %vm615 = vcmp.lt.s32.totalorder %v614, %v75
    %v616 = vsel %vm615, 1, 0
    %617 = vset.pattern.permute.xlu0 0
    %618 = vperm.xlu0 %617, %v616
    %v619 = vpop.permute.xlu0 %618
    %vm620 = vcmp.eq.s32.totalorder %v619, 1
    %v621 = vsel %vm620, %v613, 0.0
    %v622 = vpack.c.bf16 %v621, %v621
    %623 = vst [vmem:[#allocation10] sm:$0xf] %v622
    %v624 = vadd.f32 %v144, %v621
    %s625 = scalar_lea.vmem [#allocation4], 4
    %v626 = vld [vmem:[%s625] sm:$0xf]
    %627 = vmatprep.subr.bf16.mxu0 %v264
    %628 = vmatpush1.bf16.msra.mxu0 %v263
    %629 = vmatprep.subr.bf16.mxu0 %v261
    %630 = vmatpush1.bf16.msra.mxu0 %v260
    %631 = vmatprep.subr.bf16.mxu0 %v258
    %632 = vmatpush1.bf16.msra.mxu0 %v257
    %633 = vmatprep.subr.bf16.mxu0 %v255
    %634 = vmatpush1.bf16.msra.mxu0 %v254
    %635 = vmatprep.subr.bf16.mxu0 %v252
    %636 = vmatpush1.bf16.msra.mxu0 %v251
    %637 = vmatprep.subr.bf16.mxu0 %v249
    %638 = vmatpush1.bf16.msra.mxu0 %v248
    %639 = vmatprep.subr.bf16.mxu0 %v246
    %640 = vmatpush1.bf16.msra.mxu0 %v245
    %641 = vmatprep.subr.bf16.mxu0 %v243
    %642 = vmatpush1.bf16.msra.mxu0 %v242
    %643 = vmatprep.subr.bf16.mxu0 0
    %644 = vmatpush2.bf16.msra.mxu0 0
    %645 = vmatprep.subr.bf16.mxu0 0
    %646 = vmatpush2.bf16.msra.mxu0 0
    %647 = vmatprep.subr.bf16.mxu0 0
    %648 = vmatpush2.bf16.msra.mxu0 0
    %649 = vmatprep.subr.bf16.mxu0 0
    %650 = vmatpush2.bf16.msra.mxu0 0
    %651 = vmatprep.subr.bf16.mxu0 0
    %652 = vmatpush2.bf16.msra.mxu0 0
    %653 = vmatprep.subr.bf16.mxu0 0
    %654 = vmatpush2.bf16.msra.mxu0 0
    %655 = vmatprep.subr.bf16.mxu0 0
    %656 = vmatpush2.bf16.msra.mxu0 0
    %657 = vmatprep.subr.bf16.mxu0 0
    %658 = vmatpush2.bf16.msra.mxu0 0
    %659 = vmatprep.mubr.bf16.mxu0 0
    %660 = vmatmul.mubr.bf16.gmra.mxu0 %v626
    %v661 = vpop.f32.mrf.mxu0
    %v662 = vadd.f32 %v150, %v661
    %v663 = vpop.f32.mrf.mxu0
    %v664 = vadd.f32 %v154, %v663
    %v665 = vpop.f32.mrf.mxu0
    %v666 = vpop.f32.mrf.mxu0
    %667 = vdwg.mxu0
    %668 = vmatprep.subr.bf16.mxu0 0
    %669 = vmatpush1.bf16.msra.mxu0 %v265
    %670 = vmatprep.subr.bf16.mxu0 0
    %671 = vmatpush1.bf16.msra.mxu0 %v262
    %672 = vmatprep.subr.bf16.mxu0 0
    %673 = vmatpush1.bf16.msra.mxu0 %v259
    %674 = vmatprep.subr.bf16.mxu0 0
    %675 = vmatpush1.bf16.msra.mxu0 %v256
    %676 = vmatprep.subr.bf16.mxu0 0
    %677 = vmatpush1.bf16.msra.mxu0 %v253
    %678 = vmatprep.subr.bf16.mxu0 0
    %679 = vmatpush1.bf16.msra.mxu0 %v250
    %680 = vmatprep.subr.bf16.mxu0 0
    %681 = vmatpush1.bf16.msra.mxu0 %v247
    %682 = vmatprep.subr.bf16.mxu0 0
    %683 = vmatpush1.bf16.msra.mxu0 %v244
    %684 = vmatprep.subr.bf16.mxu0 0
    %685 = vmatpush2.bf16.msra.mxu0 0
    %686 = vmatprep.subr.bf16.mxu0 0
    %687 = vmatpush2.bf16.msra.mxu0 0
    %688 = vmatprep.subr.bf16.mxu0 0
    %689 = vmatpush2.bf16.msra.mxu0 0
    %690 = vmatprep.subr.bf16.mxu0 0
    %691 = vmatpush2.bf16.msra.mxu0 0
    %692 = vmatprep.subr.bf16.mxu0 0
    %693 = vmatpush2.bf16.msra.mxu0 0
    %694 = vmatprep.subr.bf16.mxu0 0
    %695 = vmatpush2.bf16.msra.mxu0 0
    %696 = vmatprep.subr.bf16.mxu0 0
    %697 = vmatpush2.bf16.msra.mxu0 0
    %698 = vmatprep.subr.bf16.mxu0 0
    %699 = vmatpush2.bf16.msra.mxu0 0
    %700 = vmatprep.mubr.bf16.mxu0 0
    %701 = vmatmul.mubr.bf16.gmra.mxu0 %v626
    %v702 = vpop.f32.mrf.mxu0
    %v703 = vadd.f32 %v158, %v702
    %v704 = vpop.f32.mrf.mxu0
    %v705 = vpop.f32.mrf.mxu0
    %v706 = vpop.f32.mrf.mxu0
    %707 = vdwg.mxu0
    %v708 = vpack.c.bf16 %v613, %v613
    %709 = vmatprep.subr.bf16.mxu0 %v490
    %710 = vmatpush1.bf16.msra.mxu0 %v489
    %711 = vmatprep.subr.bf16.mxu0 %v487
    %712 = vmatpush1.bf16.msra.mxu0 %v486
    %713 = vmatprep.subr.bf16.mxu0 %v484
    %714 = vmatpush1.bf16.msra.mxu0 %v483
    %715 = vmatprep.subr.bf16.mxu0 %v481
    %716 = vmatpush1.bf16.msra.mxu0 %v480
    %717 = vmatprep.subr.bf16.mxu0 %v478
    %718 = vmatpush1.bf16.msra.mxu0 %v477
    %719 = vmatprep.subr.bf16.mxu0 %v475
    %720 = vmatpush1.bf16.msra.mxu0 %v474
    %721 = vmatprep.subr.bf16.mxu0 %v472
    %722 = vmatpush1.bf16.msra.mxu0 %v471
    %723 = vmatprep.subr.bf16.mxu0 %v469
    %724 = vmatpush1.bf16.msra.mxu0 %v468
    %725 = vmatprep.subr.bf16.mxu0 0
    %726 = vmatpush2.bf16.msra.mxu0 0
    %727 = vmatprep.subr.bf16.mxu0 0
    %728 = vmatpush2.bf16.msra.mxu0 0
    %729 = vmatprep.subr.bf16.mxu0 0
    %730 = vmatpush2.bf16.msra.mxu0 0
    %731 = vmatprep.subr.bf16.mxu0 0
    %732 = vmatpush2.bf16.msra.mxu0 0
    %733 = vmatprep.subr.bf16.mxu0 0
    %734 = vmatpush2.bf16.msra.mxu0 0
    %735 = vmatprep.subr.bf16.mxu0 0
    %736 = vmatpush2.bf16.msra.mxu0 0
    %737 = vmatprep.subr.bf16.mxu0 0
    %738 = vmatpush2.bf16.msra.mxu0 0
    %739 = vmatprep.subr.bf16.mxu0 0
    %740 = vmatpush2.bf16.msra.mxu0 0
    %741 = vmatprep.mubr.bf16.mxu0 0
    %742 = vmatmul.mubr.bf16.gmra.mxu0 %v708
    %v743 = vpop.f32.mrf.mxu0
    %v744 = vadd.f32 %v376, %v743
    %v745 = vpop.f32.mrf.mxu0
    %v746 = vadd.f32 %v380, %v745
    %v747 = vpop.f32.mrf.mxu0
    %v748 = vpop.f32.mrf.mxu0
    %749 = vdwg.mxu0
    %750 = vmatprep.subr.bf16.mxu0 0
    %751 = vmatpush1.bf16.msra.mxu0 %v491
    %752 = vmatprep.subr.bf16.mxu0 0
    %753 = vmatpush1.bf16.msra.mxu0 %v488
    %754 = vmatprep.subr.bf16.mxu0 0
    %755 = vmatpush1.bf16.msra.mxu0 %v485
    %756 = vmatprep.subr.bf16.mxu0 0
    %757 = vmatpush1.bf16.msra.mxu0 %v482
    %758 = vmatprep.subr.bf16.mxu0 0
    %759 = vmatpush1.bf16.msra.mxu0 %v479
    %760 = vmatprep.subr.bf16.mxu0 0
    %761 = vmatpush1.bf16.msra.mxu0 %v476
    %762 = vmatprep.subr.bf16.mxu0 0
    %763 = vmatpush1.bf16.msra.mxu0 %v473
    %764 = vmatprep.subr.bf16.mxu0 0
    %765 = vmatpush1.bf16.msra.mxu0 %v470
    %766 = vmatprep.subr.bf16.mxu0 0
    %767 = vmatpush2.bf16.msra.mxu0 0
    %768 = vmatprep.subr.bf16.mxu0 0
    %769 = vmatpush2.bf16.msra.mxu0 0
    %770 = vmatprep.subr.bf16.mxu0 0
    %771 = vmatpush2.bf16.msra.mxu0 0
    %772 = vmatprep.subr.bf16.mxu0 0
    %773 = vmatpush2.bf16.msra.mxu0 0
    %774 = vmatprep.subr.bf16.mxu0 0
    %775 = vmatpush2.bf16.msra.mxu0 0
    %776 = vmatprep.subr.bf16.mxu0 0
    %777 = vmatpush2.bf16.msra.mxu0 0
    %778 = vmatprep.subr.bf16.mxu0 0
    %779 = vmatpush2.bf16.msra.mxu0 0
    %780 = vmatprep.subr.bf16.mxu0 0
    %781 = vmatpush2.bf16.msra.mxu0 0
    %782 = vmatprep.mubr.bf16.mxu0 0
    %783 = vmatmul.mubr.bf16.gmra.mxu0 %v708
    %v784 = vpop.f32.mrf.mxu0
    %v785 = vadd.f32 %v384, %v784
    %v786 = vpop.f32.mrf.mxu0
    %v787 = vpop.f32.mrf.mxu0
    %v788 = vpop.f32.mrf.mxu0
    %789 = vdwg.mxu0
    %v790 = vadd.f32 %v662, %v744
    %v791 = vmul.f32 %v790, 0.5
    %v792 = vtanh.pop %v791
    %v793 = vmul.f32 %v792, 0.5
    %v794 = vadd.f32 %v793, 0.5
    %v795 = vadd.f32 %v664, %v746
    %v796 = vmul.f32 %v795, 0.5
    %v797 = vtanh.pop %v796
    %v798 = vmul.f32 %v797, 0.5
    %v799 = vadd.f32 %v798, 0.5
    %v800 = vmul.f32 %v794, %v785
    %v801 = vadd.f32 %v703, %v800
    %v802 = vtanh.pop %v801
    %v803 = vsub.f32 1.0, %v799
    %v804 = vmul.f32 %v803, %v802
    %v805 = vmul.f32 %v799, %v613
    %v806 = vadd.f32 %v804, %v805
    %s807 = sadd.s32 %s76, 1
    %v808 = vstv %s807
    %vm809 = vcmp.lt.s32.totalorder %v808, %v75
    %v810 = vsel %vm809, 1, 0
    %811 = vset.pattern.permute.xlu0 0
    %812 = vperm.xlu0 %811, %v810
    %v813 = vpop.permute.xlu0 %812
    %vm814 = vcmp.eq.s32.totalorder %v813, 1
    %v815 = vsel %vm814, %v806, 0.0
    %v816 = vpack.c.bf16 %v815, %v815
    %s817 = scalar_lea.vmem [#allocation10], 4
    %818 = vst [vmem:[%s817] sm:$0xf] %v816
    %v819 = vadd.f32 %v624, %v815
    %s820 = scalar_lea.vmem [#allocation4], 8
    %v821 = vld [vmem:[%s820] sm:$0xf]
    %822 = vmatprep.subr.bf16.mxu0 %v264
    %823 = vmatpush1.bf16.msra.mxu0 %v263
    %824 = vmatprep.subr.bf16.mxu0 %v261
    %825 = vmatpush1.bf16.msra.mxu0 %v260
    %826 = vmatprep.subr.bf16.mxu0 %v258
    %827 = vmatpush1.bf16.msra.mxu0 %v257
    %828 = vmatprep.subr.bf16.mxu0 %v255
    %829 = vmatpush1.bf16.msra.mxu0 %v254
    %830 = vmatprep.subr.bf16.mxu0 %v252
    %831 = vmatpush1.bf16.msra.mxu0 %v251
    %832 = vmatprep.subr.bf16.mxu0 %v249
    %833 = vmatpush1.bf16.msra.mxu0 %v248
    %834 = vmatprep.subr.bf16.mxu0 %v246
    %835 = vmatpush1.bf16.msra.mxu0 %v245
    %836 = vmatprep.subr.bf16.mxu0 %v243
    %837 = vmatpush1.bf16.msra.mxu0 %v242
    %838 = vmatprep.subr.bf16.mxu0 0
    %839 = vmatpush2.bf16.msra.mxu0 0
    %840 = vmatprep.subr.bf16.mxu0 0
    %841 = vmatpush2.bf16.msra.mxu0 0
    %842 = vmatprep.subr.bf16.mxu0 0
    %843 = vmatpush2.bf16.msra.mxu0 0
    %844 = vmatprep.subr.bf16.mxu0 0
    %845 = vmatpush2.bf16.msra.mxu0 0
    %846 = vmatprep.subr.bf16.mxu0 0
    %847 = vmatpush2.bf16.msra.mxu0 0
    %848 = vmatprep.subr.bf16.mxu0 0
    %849 = vmatpush2.bf16.msra.mxu0 0
    %850 = vmatprep.subr.bf16.mxu0 0
    %851 = vmatpush2.bf16.msra.mxu0 0
    %852 = vmatprep.subr.bf16.mxu0 0
    %853 = vmatpush2.bf16.msra.mxu0 0
    %854 = vmatprep.mubr.bf16.mxu0 0
    %855 = vmatmul.mubr.bf16.gmra.mxu0 %v821
    %v856 = vpop.f32.mrf.mxu0
    %v857 = vadd.f32 %v150, %v856
    %v858 = vpop.f32.mrf.mxu0
    %v859 = vadd.f32 %v154, %v858
    %v860 = vpop.f32.mrf.mxu0
    %v861 = vpop.f32.mrf.mxu0
    %862 = vdwg.mxu0
    %863 = vmatprep.subr.bf16.mxu0 0
    %864 = vmatpush1.bf16.msra.mxu0 %v265
    %865 = vmatprep.subr.bf16.mxu0 0
    %866 = vmatpush1.bf16.msra.mxu0 %v262
    %867 = vmatprep.subr.bf16.mxu0 0
    %868 = vmatpush1.bf16.msra.mxu0 %v259
    %869 = vmatprep.subr.bf16.mxu0 0
    %870 = vmatpush1.bf16.msra.mxu0 %v256
    %871 = vmatprep.subr.bf16.mxu0 0
    %872 = vmatpush1.bf16.msra.mxu0 %v253
    %873 = vmatprep.subr.bf16.mxu0 0
    %874 = vmatpush1.bf16.msra.mxu0 %v250
    %875 = vmatprep.subr.bf16.mxu0 0
    %876 = vmatpush1.bf16.msra.mxu0 %v247
    %877 = vmatprep.subr.bf16.mxu0 0
    %878 = vmatpush1.bf16.msra.mxu0 %v244
    %879 = vmatprep.subr.bf16.mxu0 0
    %880 = vmatpush2.bf16.msra.mxu0 0
    %881 = vmatprep.subr.bf16.mxu0 0
    %882 = vmatpush2.bf16.msra.mxu0 0
    %883 = vmatprep.subr.bf16.mxu0 0
    %884 = vmatpush2.bf16.msra.mxu0 0
    %885 = vmatprep.subr.bf16.mxu0 0
    %886 = vmatpush2.bf16.msra.mxu0 0
    %887 = vmatprep.subr.bf16.mxu0 0
    %888 = vmatpush2.bf16.msra.mxu0 0
    %889 = vmatprep.subr.bf16.mxu0 0
    %890 = vmatpush2.bf16.msra.mxu0 0
    %891 = vmatprep.subr.bf16.mxu0 0
    %892 = vmatpush2.bf16.msra.mxu0 0
    %893 = vmatprep.subr.bf16.mxu0 0
    %894 = vmatpush2.bf16.msra.mxu0 0
    %895 = vmatprep.mubr.bf16.mxu0 0
    %896 = vmatmul.mubr.bf16.gmra.mxu0 %v821
    %v897 = vpop.f32.mrf.mxu0
    %v898 = vadd.f32 %v158, %v897
    %v899 = vpop.f32.mrf.mxu0
    %v900 = vpop.f32.mrf.mxu0
    %v901 = vpop.f32.mrf.mxu0
    %902 = vdwg.mxu0
    %v903 = vpack.c.bf16 %v806, %v806
    %904 = vmatprep.subr.bf16.mxu0 %v490
    %905 = vmatpush1.bf16.msra.mxu0 %v489
    %906 = vmatprep.subr.bf16.mxu0 %v487
    %907 = vmatpush1.bf16.msra.mxu0 %v486
    %908 = vmatprep.subr.bf16.mxu0 %v484
    %909 = vmatpush1.bf16.msra.mxu0 %v483
    %910 = vmatprep.subr.bf16.mxu0 %v481
    %911 = vmatpush1.bf16.msra.mxu0 %v480
    %912 = vmatprep.subr.bf16.mxu0 %v478
    %913 = vmatpush1.bf16.msra.mxu0 %v477
    %914 = vmatprep.subr.bf16.mxu0 %v475
    %915 = vmatpush1.bf16.msra.mxu0 %v474
    %916 = vmatprep.subr.bf16.mxu0 %v472
    %917 = vmatpush1.bf16.msra.mxu0 %v471
    %918 = vmatprep.subr.bf16.mxu0 %v469
    %919 = vmatpush1.bf16.msra.mxu0 %v468
    %920 = vmatprep.subr.bf16.mxu0 0
    %921 = vmatpush2.bf16.msra.mxu0 0
    %922 = vmatprep.subr.bf16.mxu0 0
    %923 = vmatpush2.bf16.msra.mxu0 0
    %924 = vmatprep.subr.bf16.mxu0 0
    %925 = vmatpush2.bf16.msra.mxu0 0
    %926 = vmatprep.subr.bf16.mxu0 0
    %927 = vmatpush2.bf16.msra.mxu0 0
    %928 = vmatprep.subr.bf16.mxu0 0
    %929 = vmatpush2.bf16.msra.mxu0 0
    %930 = vmatprep.subr.bf16.mxu0 0
    %931 = vmatpush2.bf16.msra.mxu0 0
    %932 = vmatprep.subr.bf16.mxu0 0
    %933 = vmatpush2.bf16.msra.mxu0 0
    %934 = vmatprep.subr.bf16.mxu0 0
    %935 = vmatpush2.bf16.msra.mxu0 0
    %936 = vmatprep.mubr.bf16.mxu0 0
    %937 = vmatmul.mubr.bf16.gmra.mxu0 %v903
    %v938 = vpop.f32.mrf.mxu0
    %v939 = vadd.f32 %v376, %v938
    %v940 = vpop.f32.mrf.mxu0
    %v941 = vadd.f32 %v380, %v940
    %v942 = vpop.f32.mrf.mxu0
    %v943 = vpop.f32.mrf.mxu0
    %944 = vdwg.mxu0
    %945 = vmatprep.subr.bf16.mxu0 0
    %946 = vmatpush1.bf16.msra.mxu0 %v491
    %947 = vmatprep.subr.bf16.mxu0 0
    %948 = vmatpush1.bf16.msra.mxu0 %v488
    %949 = vmatprep.subr.bf16.mxu0 0
    %950 = vmatpush1.bf16.msra.mxu0 %v485
    %951 = vmatprep.subr.bf16.mxu0 0
    %952 = vmatpush1.bf16.msra.mxu0 %v482
    %953 = vmatprep.subr.bf16.mxu0 0
    %954 = vmatpush1.bf16.msra.mxu0 %v479
    %955 = vmatprep.subr.bf16.mxu0 0
    %956 = vmatpush1.bf16.msra.mxu0 %v476
    %957 = vmatprep.subr.bf16.mxu0 0
    %958 = vmatpush1.bf16.msra.mxu0 %v473
    %959 = vmatprep.subr.bf16.mxu0 0
    %960 = vmatpush1.bf16.msra.mxu0 %v470
    %961 = vmatprep.subr.bf16.mxu0 0
    %962 = vmatpush2.bf16.msra.mxu0 0
    %963 = vmatprep.subr.bf16.mxu0 0
    %964 = vmatpush2.bf16.msra.mxu0 0
    %965 = vmatprep.subr.bf16.mxu0 0
    %966 = vmatpush2.bf16.msra.mxu0 0
    %967 = vmatprep.subr.bf16.mxu0 0
    %968 = vmatpush2.bf16.msra.mxu0 0
    %969 = vmatprep.subr.bf16.mxu0 0
    %970 = vmatpush2.bf16.msra.mxu0 0
    %971 = vmatprep.subr.bf16.mxu0 0
    %972 = vmatpush2.bf16.msra.mxu0 0
    %973 = vmatprep.subr.bf16.mxu0 0
    %974 = vmatpush2.bf16.msra.mxu0 0
    %975 = vmatprep.subr.bf16.mxu0 0
    %976 = vmatpush2.bf16.msra.mxu0 0
    %977 = vmatprep.mubr.bf16.mxu0 0
    %978 = vmatmul.mubr.bf16.gmra.mxu0 %v903
    %v979 = vpop.f32.mrf.mxu0
    %v980 = vadd.f32 %v384, %v979
    %v981 = vpop.f32.mrf.mxu0
    %v982 = vpop.f32.mrf.mxu0
    %v983 = vpop.f32.mrf.mxu0
    %984 = vdwg.mxu0
    %v985 = vadd.f32 %v857, %v939
    %v986 = vmul.f32 %v985, 0.5
    %v987 = vtanh.pop %v986
    %v988 = vmul.f32 %v987, 0.5
    %v989 = vadd.f32 %v988, 0.5
    %v990 = vadd.f32 %v859, %v941
    %v991 = vmul.f32 %v990, 0.5
    %v992 = vtanh.pop %v991
    %v993 = vmul.f32 %v992, 0.5
    %v994 = vadd.f32 %v993, 0.5
    %v995 = vmul.f32 %v989, %v980
    %v996 = vadd.f32 %v898, %v995
    %v997 = vtanh.pop %v996
    %v998 = vsub.f32 1.0, %v994
    %v999 = vmul.f32 %v998, %v997
    %v1000 = vmul.f32 %v994, %v806
    %v1001 = vadd.f32 %v999, %v1000
    %s1002 = sadd.s32 %s76, 2
    %v1003 = vstv %s1002
    %vm1004 = vcmp.lt.s32.totalorder %v1003, %v75
    %v1005 = vsel %vm1004, 1, 0
    %1006 = vset.pattern.permute.xlu0 0
    %1007 = vperm.xlu0 %1006, %v1005
    %v1008 = vpop.permute.xlu0 %1007
    %vm1009 = vcmp.eq.s32.totalorder %v1008, 1
    %v1010 = vsel %vm1009, %v1001, 0.0
    %v1011 = vpack.c.bf16 %v1010, %v1010
    %s1012 = scalar_lea.vmem [#allocation10], 8
    %1013 = vst [vmem:[%s1012] sm:$0xf] %v1011
    %v1014 = vadd.f32 %v819, %v1010
    %s1015 = scalar_lea.vmem [#allocation4], 12
    %v1016 = vld [vmem:[%s1015] sm:$0xf]
    %1017 = vmatprep.subr.bf16.mxu0 %v264
    %1018 = vmatpush1.bf16.msra.mxu0 %v263
    %1019 = vmatprep.subr.bf16.mxu0 %v261
    %1020 = vmatpush1.bf16.msra.mxu0 %v260
    %1021 = vmatprep.subr.bf16.mxu0 %v258
    %1022 = vmatpush1.bf16.msra.mxu0 %v257
    %1023 = vmatprep.subr.bf16.mxu0 %v255
    %1024 = vmatpush1.bf16.msra.mxu0 %v254
    %1025 = vmatprep.subr.bf16.mxu0 %v252
    %1026 = vmatpush1.bf16.msra.mxu0 %v251
    %1027 = vmatprep.subr.bf16.mxu0 %v249
    %1028 = vmatpush1.bf16.msra.mxu0 %v248
    %1029 = vmatprep.subr.bf16.mxu0 %v246
    %1030 = vmatpush1.bf16.msra.mxu0 %v245
    %1031 = vmatprep.subr.bf16.mxu0 %v243
    %1032 = vmatpush1.bf16.msra.mxu0 %v242
    %1033 = vmatprep.subr.bf16.mxu0 0
    %1034 = vmatpush2.bf16.msra.mxu0 0
    %1035 = vmatprep.subr.bf16.mxu0 0
    %1036 = vmatpush2.bf16.msra.mxu0 0
    %1037 = vmatprep.subr.bf16.mxu0 0
    %1038 = vmatpush2.bf16.msra.mxu0 0
    %1039 = vmatprep.subr.bf16.mxu0 0
    %1040 = vmatpush2.bf16.msra.mxu0 0
    %1041 = vmatprep.subr.bf16.mxu0 0
    %1042 = vmatpush2.bf16.msra.mxu0 0
    %1043 = vmatprep.subr.bf16.mxu0 0
    %1044 = vmatpush2.bf16.msra.mxu0 0
    %1045 = vmatprep.subr.bf16.mxu0 0
    %1046 = vmatpush2.bf16.msra.mxu0 0
    %1047 = vmatprep.subr.bf16.mxu0 0
    %1048 = vmatpush2.bf16.msra.mxu0 0
    %1049 = vmatprep.mubr.bf16.mxu0 0
    %1050 = vmatmul.mubr.bf16.gmra.mxu0 %v1016
    %v1051 = vpop.f32.mrf.mxu0
    %v1052 = vadd.f32 %v150, %v1051
    %v1053 = vpop.f32.mrf.mxu0
    %v1054 = vadd.f32 %v154, %v1053
    %v1055 = vpop.f32.mrf.mxu0
    %v1056 = vpop.f32.mrf.mxu0
    %1057 = vdwg.mxu0
    %1058 = vmatprep.subr.bf16.mxu0 0
    %1059 = vmatpush1.bf16.msra.mxu0 %v265
    %1060 = vmatprep.subr.bf16.mxu0 0
    %1061 = vmatpush1.bf16.msra.mxu0 %v262
    %1062 = vmatprep.subr.bf16.mxu0 0
    %1063 = vmatpush1.bf16.msra.mxu0 %v259
    %1064 = vmatprep.subr.bf16.mxu0 0
    %1065 = vmatpush1.bf16.msra.mxu0 %v256
    %1066 = vmatprep.subr.bf16.mxu0 0
    %1067 = vmatpush1.bf16.msra.mxu0 %v253
    %1068 = vmatprep.subr.bf16.mxu0 0
    %1069 = vmatpush1.bf16.msra.mxu0 %v250
    %1070 = vmatprep.subr.bf16.mxu0 0
    %1071 = vmatpush1.bf16.msra.mxu0 %v247
    %1072 = vmatprep.subr.bf16.mxu0 0
    %1073 = vmatpush1.bf16.msra.mxu0 %v244
    %1074 = vmatprep.subr.bf16.mxu0 0
    %1075 = vmatpush2.bf16.msra.mxu0 0
    %1076 = vmatprep.subr.bf16.mxu0 0
    %1077 = vmatpush2.bf16.msra.mxu0 0
    %1078 = vmatprep.subr.bf16.mxu0 0
    %1079 = vmatpush2.bf16.msra.mxu0 0
    %1080 = vmatprep.subr.bf16.mxu0 0
    %1081 = vmatpush2.bf16.msra.mxu0 0
    %1082 = vmatprep.subr.bf16.mxu0 0
    %1083 = vmatpush2.bf16.msra.mxu0 0
    %1084 = vmatprep.subr.bf16.mxu0 0
    %1085 = vmatpush2.bf16.msra.mxu0 0
    %1086 = vmatprep.subr.bf16.mxu0 0
    %1087 = vmatpush2.bf16.msra.mxu0 0
    %1088 = vmatprep.subr.bf16.mxu0 0
    %1089 = vmatpush2.bf16.msra.mxu0 0
    %1090 = vmatprep.mubr.bf16.mxu0 0
    %1091 = vmatmul.mubr.bf16.gmra.mxu0 %v1016
    %v1092 = vpop.f32.mrf.mxu0
    %v1093 = vadd.f32 %v158, %v1092
    %v1094 = vpop.f32.mrf.mxu0
    %v1095 = vpop.f32.mrf.mxu0
    %v1096 = vpop.f32.mrf.mxu0
    %1097 = vdwg.mxu0
    %v1098 = vpack.c.bf16 %v1001, %v1001
    %1099 = vmatprep.subr.bf16.mxu0 %v490
    %1100 = vmatpush1.bf16.msra.mxu0 %v489
    %1101 = vmatprep.subr.bf16.mxu0 %v487
    %1102 = vmatpush1.bf16.msra.mxu0 %v486
    %1103 = vmatprep.subr.bf16.mxu0 %v484
    %1104 = vmatpush1.bf16.msra.mxu0 %v483
    %1105 = vmatprep.subr.bf16.mxu0 %v481
    %1106 = vmatpush1.bf16.msra.mxu0 %v480
    %1107 = vmatprep.subr.bf16.mxu0 %v478
    %1108 = vmatpush1.bf16.msra.mxu0 %v477
    %1109 = vmatprep.subr.bf16.mxu0 %v475
    %1110 = vmatpush1.bf16.msra.mxu0 %v474
    %1111 = vmatprep.subr.bf16.mxu0 %v472
    %1112 = vmatpush1.bf16.msra.mxu0 %v471
    %1113 = vmatprep.subr.bf16.mxu0 %v469
    %1114 = vmatpush1.bf16.msra.mxu0 %v468
    %1115 = vmatprep.subr.bf16.mxu0 0
    %1116 = vmatpush2.bf16.msra.mxu0 0
    %1117 = vmatprep.subr.bf16.mxu0 0
    %1118 = vmatpush2.bf16.msra.mxu0 0
    %1119 = vmatprep.subr.bf16.mxu0 0
    %1120 = vmatpush2.bf16.msra.mxu0 0
    %1121 = vmatprep.subr.bf16.mxu0 0
    %1122 = vmatpush2.bf16.msra.mxu0 0
    %1123 = vmatprep.subr.bf16.mxu0 0
    %1124 = vmatpush2.bf16.msra.mxu0 0
    %1125 = vmatprep.subr.bf16.mxu0 0
    %1126 = vmatpush2.bf16.msra.mxu0 0
    %1127 = vmatprep.subr.bf16.mxu0 0
    %1128 = vmatpush2.bf16.msra.mxu0 0
    %1129 = vmatprep.subr.bf16.mxu0 0
    %1130 = vmatpush2.bf16.msra.mxu0 0
    %1131 = vmatprep.mubr.bf16.mxu0 0
    %1132 = vmatmul.mubr.bf16.gmra.mxu0 %v1098
    %v1133 = vpop.f32.mrf.mxu0
    %v1134 = vadd.f32 %v376, %v1133
    %v1135 = vpop.f32.mrf.mxu0
    %v1136 = vadd.f32 %v380, %v1135
    %v1137 = vpop.f32.mrf.mxu0
    %v1138 = vpop.f32.mrf.mxu0
    %1139 = vdwg.mxu0
    %1140 = vmatprep.subr.bf16.mxu0 0
    %1141 = vmatpush1.bf16.msra.mxu0 %v491
    %1142 = vmatprep.subr.bf16.mxu0 0
    %1143 = vmatpush1.bf16.msra.mxu0 %v488
    %1144 = vmatprep.subr.bf16.mxu0 0
    %1145 = vmatpush1.bf16.msra.mxu0 %v485
    %1146 = vmatprep.subr.bf16.mxu0 0
    %1147 = vmatpush1.bf16.msra.mxu0 %v482
    %1148 = vmatprep.subr.bf16.mxu0 0
    %1149 = vmatpush1.bf16.msra.mxu0 %v479
    %1150 = vmatprep.subr.bf16.mxu0 0
    %1151 = vmatpush1.bf16.msra.mxu0 %v476
    %1152 = vmatprep.subr.bf16.mxu0 0
    %1153 = vmatpush1.bf16.msra.mxu0 %v473
    %1154 = vmatprep.subr.bf16.mxu0 0
    %1155 = vmatpush1.bf16.msra.mxu0 %v470
    %1156 = vmatprep.subr.bf16.mxu0 0
    %1157 = vmatpush2.bf16.msra.mxu0 0
    %1158 = vmatprep.subr.bf16.mxu0 0
    %1159 = vmatpush2.bf16.msra.mxu0 0
    %1160 = vmatprep.subr.bf16.mxu0 0
    %1161 = vmatpush2.bf16.msra.mxu0 0
    %1162 = vmatprep.subr.bf16.mxu0 0
    %1163 = vmatpush2.bf16.msra.mxu0 0
    %1164 = vmatprep.subr.bf16.mxu0 0
    %1165 = vmatpush2.bf16.msra.mxu0 0
    %1166 = vmatprep.subr.bf16.mxu0 0
    %1167 = vmatpush2.bf16.msra.mxu0 0
    %1168 = vmatprep.subr.bf16.mxu0 0
    %1169 = vmatpush2.bf16.msra.mxu0 0
    %1170 = vmatprep.subr.bf16.mxu0 0
    %1171 = vmatpush2.bf16.msra.mxu0 0
    %1172 = vmatprep.mubr.bf16.mxu0 0
    %1173 = vmatmul.mubr.bf16.gmra.mxu0 %v1098
    %v1174 = vpop.f32.mrf.mxu0
    %v1175 = vadd.f32 %v384, %v1174
    %v1176 = vpop.f32.mrf.mxu0
    %v1177 = vpop.f32.mrf.mxu0
    %v1178 = vpop.f32.mrf.mxu0
    %1179 = vdwg.mxu0
    %v1180 = vadd.f32 %v1052, %v1134
    %v1181 = vmul.f32 %v1180, 0.5
    %v1182 = vtanh.pop %v1181
    %v1183 = vmul.f32 %v1182, 0.5
    %v1184 = vadd.f32 %v1183, 0.5
    %v1185 = vadd.f32 %v1054, %v1136
    %v1186 = vmul.f32 %v1185, 0.5
    %v1187 = vtanh.pop %v1186
    %v1188 = vmul.f32 %v1187, 0.5
    %v1189 = vadd.f32 %v1188, 0.5
    %v1190 = vmul.f32 %v1184, %v1175
    %v1191 = vadd.f32 %v1093, %v1190
    %v1192 = vtanh.pop %v1191
    %v1193 = vsub.f32 1.0, %v1189
    %v1194 = vmul.f32 %v1193, %v1192
    %v1195 = vmul.f32 %v1189, %v1001
    %v1196 = vadd.f32 %v1194, %v1195
    %s1197 = sadd.s32 %s76, 3
    %v1198 = vstv %s1197
    %vm1199 = vcmp.lt.s32.totalorder %v1198, %v75
    %v1200 = vsel %vm1199, 1, 0
    %1201 = vset.pattern.permute.xlu0 0
    %1202 = vperm.xlu0 %1201, %v1200
    %v1203 = vpop.permute.xlu0 %1202
    %vm1204 = vcmp.eq.s32.totalorder %v1203, 1
    %v1205 = vsel %vm1204, %v1196, 0.0
    %v1206 = vpack.c.bf16 %v1205, %v1205
    %s1207 = scalar_lea.vmem [#allocation10], 12
    %1208 = vst [vmem:[%s1207] sm:$0xf] %v1206
    %v1209 = vadd.f32 %v1014, %v1205
    %s1210 = scalar_lea.vmem [#allocation4], 16
    %v1211 = vld [vmem:[%s1210] sm:$0xf]
    %1212 = vmatprep.subr.bf16.mxu0 %v264
    %1213 = vmatpush1.bf16.msra.mxu0 %v263
    %1214 = vmatprep.subr.bf16.mxu0 %v261
    %1215 = vmatpush1.bf16.msra.mxu0 %v260
    %1216 = vmatprep.subr.bf16.mxu0 %v258
    %1217 = vmatpush1.bf16.msra.mxu0 %v257
    %1218 = vmatprep.subr.bf16.mxu0 %v255
    %1219 = vmatpush1.bf16.msra.mxu0 %v254
    %1220 = vmatprep.subr.bf16.mxu0 %v252
    %1221 = vmatpush1.bf16.msra.mxu0 %v251
    %1222 = vmatprep.subr.bf16.mxu0 %v249
    %1223 = vmatpush1.bf16.msra.mxu0 %v248
    %1224 = vmatprep.subr.bf16.mxu0 %v246
    %1225 = vmatpush1.bf16.msra.mxu0 %v245
    %1226 = vmatprep.subr.bf16.mxu0 %v243
    %1227 = vmatpush1.bf16.msra.mxu0 %v242
    %1228 = vmatprep.subr.bf16.mxu0 0
    %1229 = vmatpush2.bf16.msra.mxu0 0
    %1230 = vmatprep.subr.bf16.mxu0 0
    %1231 = vmatpush2.bf16.msra.mxu0 0
    %1232 = vmatprep.subr.bf16.mxu0 0
    %1233 = vmatpush2.bf16.msra.mxu0 0
    %1234 = vmatprep.subr.bf16.mxu0 0
    %1235 = vmatpush2.bf16.msra.mxu0 0
    %1236 = vmatprep.subr.bf16.mxu0 0
    %1237 = vmatpush2.bf16.msra.mxu0 0
    %1238 = vmatprep.subr.bf16.mxu0 0
    %1239 = vmatpush2.bf16.msra.mxu0 0
    %1240 = vmatprep.subr.bf16.mxu0 0
    %1241 = vmatpush2.bf16.msra.mxu0 0
    %1242 = vmatprep.subr.bf16.mxu0 0
    %1243 = vmatpush2.bf16.msra.mxu0 0
    %1244 = vmatprep.mubr.bf16.mxu0 0
    %1245 = vmatmul.mubr.bf16.gmra.mxu0 %v1211
    %v1246 = vpop.f32.mrf.mxu0
    %v1247 = vadd.f32 %v150, %v1246
    %v1248 = vpop.f32.mrf.mxu0
    %v1249 = vadd.f32 %v154, %v1248
    %v1250 = vpop.f32.mrf.mxu0
    %v1251 = vpop.f32.mrf.mxu0
    %1252 = vdwg.mxu0
    %1253 = vmatprep.subr.bf16.mxu0 0
    %1254 = vmatpush1.bf16.msra.mxu0 %v265
    %1255 = vmatprep.subr.bf16.mxu0 0
    %1256 = vmatpush1.bf16.msra.mxu0 %v262
    %1257 = vmatprep.subr.bf16.mxu0 0
    %1258 = vmatpush1.bf16.msra.mxu0 %v259
    %1259 = vmatprep.subr.bf16.mxu0 0
    %1260 = vmatpush1.bf16.msra.mxu0 %v256
    %1261 = vmatprep.subr.bf16.mxu0 0
    %1262 = vmatpush1.bf16.msra.mxu0 %v253
    %1263 = vmatprep.subr.bf16.mxu0 0
    %1264 = vmatpush1.bf16.msra.mxu0 %v250
    %1265 = vmatprep.subr.bf16.mxu0 0
    %1266 = vmatpush1.bf16.msra.mxu0 %v247
    %1267 = vmatprep.subr.bf16.mxu0 0
    %1268 = vmatpush1.bf16.msra.mxu0 %v244
    %1269 = vmatprep.subr.bf16.mxu0 0
    %1270 = vmatpush2.bf16.msra.mxu0 0
    %1271 = vmatprep.subr.bf16.mxu0 0
    %1272 = vmatpush2.bf16.msra.mxu0 0
    %1273 = vmatprep.subr.bf16.mxu0 0
    %1274 = vmatpush2.bf16.msra.mxu0 0
    %1275 = vmatprep.subr.bf16.mxu0 0
    %1276 = vmatpush2.bf16.msra.mxu0 0
    %1277 = vmatprep.subr.bf16.mxu0 0
    %1278 = vmatpush2.bf16.msra.mxu0 0
    %1279 = vmatprep.subr.bf16.mxu0 0
    %1280 = vmatpush2.bf16.msra.mxu0 0
    %1281 = vmatprep.subr.bf16.mxu0 0
    %1282 = vmatpush2.bf16.msra.mxu0 0
    %1283 = vmatprep.subr.bf16.mxu0 0
    %1284 = vmatpush2.bf16.msra.mxu0 0
    %1285 = vmatprep.mubr.bf16.mxu0 0
    %1286 = vmatmul.mubr.bf16.gmra.mxu0 %v1211
    %v1287 = vpop.f32.mrf.mxu0
    %v1288 = vadd.f32 %v158, %v1287
    %v1289 = vpop.f32.mrf.mxu0
    %v1290 = vpop.f32.mrf.mxu0
    %v1291 = vpop.f32.mrf.mxu0
    %1292 = vdwg.mxu0
    %v1293 = vpack.c.bf16 %v1196, %v1196
    %1294 = vmatprep.subr.bf16.mxu0 %v490
    %1295 = vmatpush1.bf16.msra.mxu0 %v489
    %1296 = vmatprep.subr.bf16.mxu0 %v487
    %1297 = vmatpush1.bf16.msra.mxu0 %v486
    %1298 = vmatprep.subr.bf16.mxu0 %v484
    %1299 = vmatpush1.bf16.msra.mxu0 %v483
    %1300 = vmatprep.subr.bf16.mxu0 %v481
    %1301 = vmatpush1.bf16.msra.mxu0 %v480
    %1302 = vmatprep.subr.bf16.mxu0 %v478
    %1303 = vmatpush1.bf16.msra.mxu0 %v477
    %1304 = vmatprep.subr.bf16.mxu0 %v475
    %1305 = vmatpush1.bf16.msra.mxu0 %v474
    %1306 = vmatprep.subr.bf16.mxu0 %v472
    %1307 = vmatpush1.bf16.msra.mxu0 %v471
    %1308 = vmatprep.subr.bf16.mxu0 %v469
    %1309 = vmatpush1.bf16.msra.mxu0 %v468
    %1310 = vmatprep.subr.bf16.mxu0 0
    %1311 = vmatpush2.bf16.msra.mxu0 0
    %1312 = vmatprep.subr.bf16.mxu0 0
    %1313 = vmatpush2.bf16.msra.mxu0 0
    %1314 = vmatprep.subr.bf16.mxu0 0
    %1315 = vmatpush2.bf16.msra.mxu0 0
    %1316 = vmatprep.subr.bf16.mxu0 0
    %1317 = vmatpush2.bf16.msra.mxu0 0
    %1318 = vmatprep.subr.bf16.mxu0 0
    %1319 = vmatpush2.bf16.msra.mxu0 0
    %1320 = vmatprep.subr.bf16.mxu0 0
    %1321 = vmatpush2.bf16.msra.mxu0 0
    %1322 = vmatprep.subr.bf16.mxu0 0
    %1323 = vmatpush2.bf16.msra.mxu0 0
    %1324 = vmatprep.subr.bf16.mxu0 0
    %1325 = vmatpush2.bf16.msra.mxu0 0
    %1326 = vmatprep.mubr.bf16.mxu0 0
    %1327 = vmatmul.mubr.bf16.gmra.mxu0 %v1293
    %v1328 = vpop.f32.mrf.mxu0
    %v1329 = vadd.f32 %v376, %v1328
    %v1330 = vpop.f32.mrf.mxu0
    %v1331 = vadd.f32 %v380, %v1330
    %v1332 = vpop.f32.mrf.mxu0
    %v1333 = vpop.f32.mrf.mxu0
    %1334 = vdwg.mxu0
    %1335 = vmatprep.subr.bf16.mxu0 0
    %1336 = vmatpush1.bf16.msra.mxu0 %v491
    %1337 = vmatprep.subr.bf16.mxu0 0
    %1338 = vmatpush1.bf16.msra.mxu0 %v488
    %1339 = vmatprep.subr.bf16.mxu0 0
    %1340 = vmatpush1.bf16.msra.mxu0 %v485
    %1341 = vmatprep.subr.bf16.mxu0 0
    %1342 = vmatpush1.bf16.msra.mxu0 %v482
    %1343 = vmatprep.subr.bf16.mxu0 0
    %1344 = vmatpush1.bf16.msra.mxu0 %v479
    %1345 = vmatprep.subr.bf16.mxu0 0
    %1346 = vmatpush1.bf16.msra.mxu0 %v476
    %1347 = vmatprep.subr.bf16.mxu0 0
    %1348 = vmatpush1.bf16.msra.mxu0 %v473
    %1349 = vmatprep.subr.bf16.mxu0 0
    %1350 = vmatpush1.bf16.msra.mxu0 %v470
    %1351 = vmatprep.subr.bf16.mxu0 0
    %1352 = vmatpush2.bf16.msra.mxu0 0
    %1353 = vmatprep.subr.bf16.mxu0 0
    %1354 = vmatpush2.bf16.msra.mxu0 0
    %1355 = vmatprep.subr.bf16.mxu0 0
    %1356 = vmatpush2.bf16.msra.mxu0 0
    %1357 = vmatprep.subr.bf16.mxu0 0
    %1358 = vmatpush2.bf16.msra.mxu0 0
    %1359 = vmatprep.subr.bf16.mxu0 0
    %1360 = vmatpush2.bf16.msra.mxu0 0
    %1361 = vmatprep.subr.bf16.mxu0 0
    %1362 = vmatpush2.bf16.msra.mxu0 0
    %1363 = vmatprep.subr.bf16.mxu0 0
    %1364 = vmatpush2.bf16.msra.mxu0 0
    %1365 = vmatprep.subr.bf16.mxu0 0
    %1366 = vmatpush2.bf16.msra.mxu0 0
    %1367 = vmatprep.mubr.bf16.mxu0 0
    %1368 = vmatmul.mubr.bf16.gmra.mxu0 %v1293
    %v1369 = vpop.f32.mrf.mxu0
    %v1370 = vadd.f32 %v384, %v1369
    %v1371 = vpop.f32.mrf.mxu0
    %v1372 = vpop.f32.mrf.mxu0
    %v1373 = vpop.f32.mrf.mxu0
    %1374 = vdwg.mxu0
    %v1375 = vadd.f32 %v1247, %v1329
    %v1376 = vmul.f32 %v1375, 0.5
    %v1377 = vtanh.pop %v1376
    %v1378 = vmul.f32 %v1377, 0.5
    %v1379 = vadd.f32 %v1378, 0.5
    %v1380 = vadd.f32 %v1249, %v1331
    %v1381 = vmul.f32 %v1380, 0.5
    %v1382 = vtanh.pop %v1381
    %v1383 = vmul.f32 %v1382, 0.5
    %v1384 = vadd.f32 %v1383, 0.5
    %v1385 = vmul.f32 %v1379, %v1370
    %v1386 = vadd.f32 %v1288, %v1385
    %v1387 = vtanh.pop %v1386
    %v1388 = vsub.f32 1.0, %v1384
    %v1389 = vmul.f32 %v1388, %v1387
    %v1390 = vmul.f32 %v1384, %v1196
    %v1391 = vadd.f32 %v1389, %v1390
    %s1392 = sadd.s32 %s76, 4
    %v1393 = vstv %s1392
    %vm1394 = vcmp.lt.s32.totalorder %v1393, %v75
    %v1395 = vsel %vm1394, 1, 0
    %1396 = vset.pattern.permute.xlu0 0
    %1397 = vperm.xlu0 %1396, %v1395
    %v1398 = vpop.permute.xlu0 %1397
    %vm1399 = vcmp.eq.s32.totalorder %v1398, 1
    %v1400 = vsel %vm1399, %v1391, 0.0
    %v1401 = vpack.c.bf16 %v1400, %v1400
    %s1402 = scalar_lea.vmem [#allocation10], 16
    %1403 = vst [vmem:[%s1402] sm:$0xf] %v1401
    %v1404 = vadd.f32 %v1209, %v1400
    %s1405 = scalar_lea.vmem [#allocation4], 20
    %v1406 = vld [vmem:[%s1405] sm:$0xf]
    %1407 = vmatprep.subr.bf16.mxu0 %v264
    %1408 = vmatpush1.bf16.msra.mxu0 %v263
    %1409 = vmatprep.subr.bf16.mxu0 %v261
    %1410 = vmatpush1.bf16.msra.mxu0 %v260
    %1411 = vmatprep.subr.bf16.mxu0 %v258
    %1412 = vmatpush1.bf16.msra.mxu0 %v257
    %1413 = vmatprep.subr.bf16.mxu0 %v255
    %1414 = vmatpush1.bf16.msra.mxu0 %v254
    %1415 = vmatprep.subr.bf16.mxu0 %v252
    %1416 = vmatpush1.bf16.msra.mxu0 %v251
    %1417 = vmatprep.subr.bf16.mxu0 %v249
    %1418 = vmatpush1.bf16.msra.mxu0 %v248
    %1419 = vmatprep.subr.bf16.mxu0 %v246
    %1420 = vmatpush1.bf16.msra.mxu0 %v245
    %1421 = vmatprep.subr.bf16.mxu0 %v243
    %1422 = vmatpush1.bf16.msra.mxu0 %v242
    %1423 = vmatprep.subr.bf16.mxu0 0
    %1424 = vmatpush2.bf16.msra.mxu0 0
    %1425 = vmatprep.subr.bf16.mxu0 0
    %1426 = vmatpush2.bf16.msra.mxu0 0
    %1427 = vmatprep.subr.bf16.mxu0 0
    %1428 = vmatpush2.bf16.msra.mxu0 0
    %1429 = vmatprep.subr.bf16.mxu0 0
    %1430 = vmatpush2.bf16.msra.mxu0 0
    %1431 = vmatprep.subr.bf16.mxu0 0
    %1432 = vmatpush2.bf16.msra.mxu0 0
    %1433 = vmatprep.subr.bf16.mxu0 0
    %1434 = vmatpush2.bf16.msra.mxu0 0
    %1435 = vmatprep.subr.bf16.mxu0 0
    %1436 = vmatpush2.bf16.msra.mxu0 0
    %1437 = vmatprep.subr.bf16.mxu0 0
    %1438 = vmatpush2.bf16.msra.mxu0 0
    %1439 = vmatprep.mubr.bf16.mxu0 0
    %1440 = vmatmul.mubr.bf16.gmra.mxu0 %v1406
    %v1441 = vpop.f32.mrf.mxu0
    %v1442 = vadd.f32 %v150, %v1441
    %v1443 = vpop.f32.mrf.mxu0
    %v1444 = vadd.f32 %v154, %v1443
    %v1445 = vpop.f32.mrf.mxu0
    %v1446 = vpop.f32.mrf.mxu0
    %1447 = vdwg.mxu0
    %1448 = vmatprep.subr.bf16.mxu0 0
    %1449 = vmatpush1.bf16.msra.mxu0 %v265
    %1450 = vmatprep.subr.bf16.mxu0 0
    %1451 = vmatpush1.bf16.msra.mxu0 %v262
    %1452 = vmatprep.subr.bf16.mxu0 0
    %1453 = vmatpush1.bf16.msra.mxu0 %v259
    %1454 = vmatprep.subr.bf16.mxu0 0
    %1455 = vmatpush1.bf16.msra.mxu0 %v256
    %1456 = vmatprep.subr.bf16.mxu0 0
    %1457 = vmatpush1.bf16.msra.mxu0 %v253
    %1458 = vmatprep.subr.bf16.mxu0 0
    %1459 = vmatpush1.bf16.msra.mxu0 %v250
    %1460 = vmatprep.subr.bf16.mxu0 0
    %1461 = vmatpush1.bf16.msra.mxu0 %v247
    %1462 = vmatprep.subr.bf16.mxu0 0
    %1463 = vmatpush1.bf16.msra.mxu0 %v244
    %1464 = vmatprep.subr.bf16.mxu0 0
    %1465 = vmatpush2.bf16.msra.mxu0 0
    %1466 = vmatprep.subr.bf16.mxu0 0
    %1467 = vmatpush2.bf16.msra.mxu0 0
    %1468 = vmatprep.subr.bf16.mxu0 0
    %1469 = vmatpush2.bf16.msra.mxu0 0
    %1470 = vmatprep.subr.bf16.mxu0 0
    %1471 = vmatpush2.bf16.msra.mxu0 0
    %1472 = vmatprep.subr.bf16.mxu0 0
    %1473 = vmatpush2.bf16.msra.mxu0 0
    %1474 = vmatprep.subr.bf16.mxu0 0
    %1475 = vmatpush2.bf16.msra.mxu0 0
    %1476 = vmatprep.subr.bf16.mxu0 0
    %1477 = vmatpush2.bf16.msra.mxu0 0
    %1478 = vmatprep.subr.bf16.mxu0 0
    %1479 = vmatpush2.bf16.msra.mxu0 0
    %1480 = vmatprep.mubr.bf16.mxu0 0
    %1481 = vmatmul.mubr.bf16.gmra.mxu0 %v1406
    %v1482 = vpop.f32.mrf.mxu0
    %v1483 = vadd.f32 %v158, %v1482
    %v1484 = vpop.f32.mrf.mxu0
    %v1485 = vpop.f32.mrf.mxu0
    %v1486 = vpop.f32.mrf.mxu0
    %1487 = vdwg.mxu0
    %v1488 = vpack.c.bf16 %v1391, %v1391
    %1489 = vmatprep.subr.bf16.mxu0 %v490
    %1490 = vmatpush1.bf16.msra.mxu0 %v489
    %1491 = vmatprep.subr.bf16.mxu0 %v487
    %1492 = vmatpush1.bf16.msra.mxu0 %v486
    %1493 = vmatprep.subr.bf16.mxu0 %v484
    %1494 = vmatpush1.bf16.msra.mxu0 %v483
    %1495 = vmatprep.subr.bf16.mxu0 %v481
    %1496 = vmatpush1.bf16.msra.mxu0 %v480
    %1497 = vmatprep.subr.bf16.mxu0 %v478
    %1498 = vmatpush1.bf16.msra.mxu0 %v477
    %1499 = vmatprep.subr.bf16.mxu0 %v475
    %1500 = vmatpush1.bf16.msra.mxu0 %v474
    %1501 = vmatprep.subr.bf16.mxu0 %v472
    %1502 = vmatpush1.bf16.msra.mxu0 %v471
    %1503 = vmatprep.subr.bf16.mxu0 %v469
    %1504 = vmatpush1.bf16.msra.mxu0 %v468
    %1505 = vmatprep.subr.bf16.mxu0 0
    %1506 = vmatpush2.bf16.msra.mxu0 0
    %1507 = vmatprep.subr.bf16.mxu0 0
    %1508 = vmatpush2.bf16.msra.mxu0 0
    %1509 = vmatprep.subr.bf16.mxu0 0
    %1510 = vmatpush2.bf16.msra.mxu0 0
    %1511 = vmatprep.subr.bf16.mxu0 0
    %1512 = vmatpush2.bf16.msra.mxu0 0
    %1513 = vmatprep.subr.bf16.mxu0 0
    %1514 = vmatpush2.bf16.msra.mxu0 0
    %1515 = vmatprep.subr.bf16.mxu0 0
    %1516 = vmatpush2.bf16.msra.mxu0 0
    %1517 = vmatprep.subr.bf16.mxu0 0
    %1518 = vmatpush2.bf16.msra.mxu0 0
    %1519 = vmatprep.subr.bf16.mxu0 0
    %1520 = vmatpush2.bf16.msra.mxu0 0
    %1521 = vmatprep.mubr.bf16.mxu0 0
    %1522 = vmatmul.mubr.bf16.gmra.mxu0 %v1488
    %v1523 = vpop.f32.mrf.mxu0
    %v1524 = vadd.f32 %v376, %v1523
    %v1525 = vpop.f32.mrf.mxu0
    %v1526 = vadd.f32 %v380, %v1525
    %v1527 = vpop.f32.mrf.mxu0
    %v1528 = vpop.f32.mrf.mxu0
    %1529 = vdwg.mxu0
    %1530 = vmatprep.subr.bf16.mxu0 0
    %1531 = vmatpush1.bf16.msra.mxu0 %v491
    %1532 = vmatprep.subr.bf16.mxu0 0
    %1533 = vmatpush1.bf16.msra.mxu0 %v488
    %1534 = vmatprep.subr.bf16.mxu0 0
    %1535 = vmatpush1.bf16.msra.mxu0 %v485
    %1536 = vmatprep.subr.bf16.mxu0 0
    %1537 = vmatpush1.bf16.msra.mxu0 %v482
    %1538 = vmatprep.subr.bf16.mxu0 0
    %1539 = vmatpush1.bf16.msra.mxu0 %v479
    %1540 = vmatprep.subr.bf16.mxu0 0
    %1541 = vmatpush1.bf16.msra.mxu0 %v476
    %1542 = vmatprep.subr.bf16.mxu0 0
    %1543 = vmatpush1.bf16.msra.mxu0 %v473
    %1544 = vmatprep.subr.bf16.mxu0 0
    %1545 = vmatpush1.bf16.msra.mxu0 %v470
    %1546 = vmatprep.subr.bf16.mxu0 0
    %1547 = vmatpush2.bf16.msra.mxu0 0
    %1548 = vmatprep.subr.bf16.mxu0 0
    %1549 = vmatpush2.bf16.msra.mxu0 0
    %1550 = vmatprep.subr.bf16.mxu0 0
    %1551 = vmatpush2.bf16.msra.mxu0 0
    %1552 = vmatprep.subr.bf16.mxu0 0
    %1553 = vmatpush2.bf16.msra.mxu0 0
    %1554 = vmatprep.subr.bf16.mxu0 0
    %1555 = vmatpush2.bf16.msra.mxu0 0
    %1556 = vmatprep.subr.bf16.mxu0 0
    %1557 = vmatpush2.bf16.msra.mxu0 0
    %1558 = vmatprep.subr.bf16.mxu0 0
    %1559 = vmatpush2.bf16.msra.mxu0 0
    %1560 = vmatprep.subr.bf16.mxu0 0
    %1561 = vmatpush2.bf16.msra.mxu0 0
    %1562 = vmatprep.mubr.bf16.mxu0 0
    %1563 = vmatmul.mubr.bf16.gmra.mxu0 %v1488
    %v1564 = vpop.f32.mrf.mxu0
    %v1565 = vadd.f32 %v384, %v1564
    %v1566 = vpop.f32.mrf.mxu0
    %v1567 = vpop.f32.mrf.mxu0
    %v1568 = vpop.f32.mrf.mxu0
    %1569 = vdwg.mxu0
    %v1570 = vadd.f32 %v1442, %v1524
    %v1571 = vmul.f32 %v1570, 0.5
    %v1572 = vtanh.pop %v1571
    %v1573 = vmul.f32 %v1572, 0.5
    %v1574 = vadd.f32 %v1573, 0.5
    %v1575 = vadd.f32 %v1444, %v1526
    %v1576 = vmul.f32 %v1575, 0.5
    %v1577 = vtanh.pop %v1576
    %v1578 = vmul.f32 %v1577, 0.5
    %v1579 = vadd.f32 %v1578, 0.5
    %v1580 = vmul.f32 %v1574, %v1565
    %v1581 = vadd.f32 %v1483, %v1580
    %v1582 = vtanh.pop %v1581
    %v1583 = vsub.f32 1.0, %v1579
    %v1584 = vmul.f32 %v1583, %v1582
    %v1585 = vmul.f32 %v1579, %v1391
    %v1586 = vadd.f32 %v1584, %v1585
    %s1587 = sadd.s32 %s76, 5
    %v1588 = vstv %s1587
    %vm1589 = vcmp.lt.s32.totalorder %v1588, %v75
    %v1590 = vsel %vm1589, 1, 0
    %1591 = vset.pattern.permute.xlu0 0
    %1592 = vperm.xlu0 %1591, %v1590
    %v1593 = vpop.permute.xlu0 %1592
    %vm1594 = vcmp.eq.s32.totalorder %v1593, 1
    %v1595 = vsel %vm1594, %v1586, 0.0
    %v1596 = vpack.c.bf16 %v1595, %v1595
    %s1597 = scalar_lea.vmem [#allocation10], 20
    %1598 = vst [vmem:[%s1597] sm:$0xf] %v1596
    %v1599 = vadd.f32 %v1404, %v1595
    %s1600 = scalar_lea.vmem [#allocation4], 24
    %v1601 = vld [vmem:[%s1600] sm:$0xf]
    %1602 = vmatprep.subr.bf16.mxu0 %v264
    %1603 = vmatpush1.bf16.msra.mxu0 %v263
    %1604 = vmatprep.subr.bf16.mxu0 %v261
    %1605 = vmatpush1.bf16.msra.mxu0 %v260
    %1606 = vmatprep.subr.bf16.mxu0 %v258
    %1607 = vmatpush1.bf16.msra.mxu0 %v257
    %1608 = vmatprep.subr.bf16.mxu0 %v255
    %1609 = vmatpush1.bf16.msra.mxu0 %v254
    %1610 = vmatprep.subr.bf16.mxu0 %v252
    %1611 = vmatpush1.bf16.msra.mxu0 %v251
    %1612 = vmatprep.subr.bf16.mxu0 %v249
    %1613 = vmatpush1.bf16.msra.mxu0 %v248
    %1614 = vmatprep.subr.bf16.mxu0 %v246
    %1615 = vmatpush1.bf16.msra.mxu0 %v245
    %1616 = vmatprep.subr.bf16.mxu0 %v243
    %1617 = vmatpush1.bf16.msra.mxu0 %v242
    %1618 = vmatprep.subr.bf16.mxu0 0
    %1619 = vmatpush2.bf16.msra.mxu0 0
    %1620 = vmatprep.subr.bf16.mxu0 0
    %1621 = vmatpush2.bf16.msra.mxu0 0
    %1622 = vmatprep.subr.bf16.mxu0 0
    %1623 = vmatpush2.bf16.msra.mxu0 0
    %1624 = vmatprep.subr.bf16.mxu0 0
    %1625 = vmatpush2.bf16.msra.mxu0 0
    %1626 = vmatprep.subr.bf16.mxu0 0
    %1627 = vmatpush2.bf16.msra.mxu0 0
    %1628 = vmatprep.subr.bf16.mxu0 0
    %1629 = vmatpush2.bf16.msra.mxu0 0
    %1630 = vmatprep.subr.bf16.mxu0 0
    %1631 = vmatpush2.bf16.msra.mxu0 0
    %1632 = vmatprep.subr.bf16.mxu0 0
    %1633 = vmatpush2.bf16.msra.mxu0 0
    %1634 = vmatprep.mubr.bf16.mxu0 0
    %1635 = vmatmul.mubr.bf16.gmra.mxu0 %v1601
    %v1636 = vpop.f32.mrf.mxu0
    %v1637 = vadd.f32 %v150, %v1636
    %v1638 = vpop.f32.mrf.mxu0
    %v1639 = vadd.f32 %v154, %v1638
    %v1640 = vpop.f32.mrf.mxu0
    %v1641 = vpop.f32.mrf.mxu0
    %1642 = vdwg.mxu0
    %1643 = vmatprep.subr.bf16.mxu0 0
    %1644 = vmatpush1.bf16.msra.mxu0 %v265
    %1645 = vmatprep.subr.bf16.mxu0 0
    %1646 = vmatpush1.bf16.msra.mxu0 %v262
    %1647 = vmatprep.subr.bf16.mxu0 0
    %1648 = vmatpush1.bf16.msra.mxu0 %v259
    %1649 = vmatprep.subr.bf16.mxu0 0
    %1650 = vmatpush1.bf16.msra.mxu0 %v256
    %1651 = vmatprep.subr.bf16.mxu0 0
    %1652 = vmatpush1.bf16.msra.mxu0 %v253
    %1653 = vmatprep.subr.bf16.mxu0 0
    %1654 = vmatpush1.bf16.msra.mxu0 %v250
    %1655 = vmatprep.subr.bf16.mxu0 0
    %1656 = vmatpush1.bf16.msra.mxu0 %v247
    %1657 = vmatprep.subr.bf16.mxu0 0
    %1658 = vmatpush1.bf16.msra.mxu0 %v244
    %1659 = vmatprep.subr.bf16.mxu0 0
    %1660 = vmatpush2.bf16.msra.mxu0 0
    %1661 = vmatprep.subr.bf16.mxu0 0
    %1662 = vmatpush2.bf16.msra.mxu0 0
    %1663 = vmatprep.subr.bf16.mxu0 0
    %1664 = vmatpush2.bf16.msra.mxu0 0
    %1665 = vmatprep.subr.bf16.mxu0 0
    %1666 = vmatpush2.bf16.msra.mxu0 0
    %1667 = vmatprep.subr.bf16.mxu0 0
    %1668 = vmatpush2.bf16.msra.mxu0 0
    %1669 = vmatprep.subr.bf16.mxu0 0
    %1670 = vmatpush2.bf16.msra.mxu0 0
    %1671 = vmatprep.subr.bf16.mxu0 0
    %1672 = vmatpush2.bf16.msra.mxu0 0
    %1673 = vmatprep.subr.bf16.mxu0 0
    %1674 = vmatpush2.bf16.msra.mxu0 0
    %1675 = vmatprep.mubr.bf16.mxu0 0
    %1676 = vmatmul.mubr.bf16.gmra.mxu0 %v1601
    %v1677 = vpop.f32.mrf.mxu0
    %v1678 = vadd.f32 %v158, %v1677
    %v1679 = vpop.f32.mrf.mxu0
    %v1680 = vpop.f32.mrf.mxu0
    %v1681 = vpop.f32.mrf.mxu0
    %1682 = vdwg.mxu0
    %v1683 = vpack.c.bf16 %v1586, %v1586
    %1684 = vmatprep.subr.bf16.mxu0 %v490
    %1685 = vmatpush1.bf16.msra.mxu0 %v489
    %1686 = vmatprep.subr.bf16.mxu0 %v487
    %1687 = vmatpush1.bf16.msra.mxu0 %v486
    %1688 = vmatprep.subr.bf16.mxu0 %v484
    %1689 = vmatpush1.bf16.msra.mxu0 %v483
    %1690 = vmatprep.subr.bf16.mxu0 %v481
    %1691 = vmatpush1.bf16.msra.mxu0 %v480
    %1692 = vmatprep.subr.bf16.mxu0 %v478
    %1693 = vmatpush1.bf16.msra.mxu0 %v477
    %1694 = vmatprep.subr.bf16.mxu0 %v475
    %1695 = vmatpush1.bf16.msra.mxu0 %v474
    %1696 = vmatprep.subr.bf16.mxu0 %v472
    %1697 = vmatpush1.bf16.msra.mxu0 %v471
    %1698 = vmatprep.subr.bf16.mxu0 %v469
    %1699 = vmatpush1.bf16.msra.mxu0 %v468
    %1700 = vmatprep.subr.bf16.mxu0 0
    %1701 = vmatpush2.bf16.msra.mxu0 0
    %1702 = vmatprep.subr.bf16.mxu0 0
    %1703 = vmatpush2.bf16.msra.mxu0 0
    %1704 = vmatprep.subr.bf16.mxu0 0
    %1705 = vmatpush2.bf16.msra.mxu0 0
    %1706 = vmatprep.subr.bf16.mxu0 0
    %1707 = vmatpush2.bf16.msra.mxu0 0
    %1708 = vmatprep.subr.bf16.mxu0 0
    %1709 = vmatpush2.bf16.msra.mxu0 0
    %1710 = vmatprep.subr.bf16.mxu0 0
    %1711 = vmatpush2.bf16.msra.mxu0 0
    %1712 = vmatprep.subr.bf16.mxu0 0
    %1713 = vmatpush2.bf16.msra.mxu0 0
    %1714 = vmatprep.subr.bf16.mxu0 0
    %1715 = vmatpush2.bf16.msra.mxu0 0
    %1716 = vmatprep.mubr.bf16.mxu0 0
    %1717 = vmatmul.mubr.bf16.gmra.mxu0 %v1683
    %v1718 = vpop.f32.mrf.mxu0
    %v1719 = vadd.f32 %v376, %v1718
    %v1720 = vpop.f32.mrf.mxu0
    %v1721 = vadd.f32 %v380, %v1720
    %v1722 = vpop.f32.mrf.mxu0
    %v1723 = vpop.f32.mrf.mxu0
    %1724 = vdwg.mxu0
    %1725 = vmatprep.subr.bf16.mxu0 0
    %1726 = vmatpush1.bf16.msra.mxu0 %v491
    %1727 = vmatprep.subr.bf16.mxu0 0
    %1728 = vmatpush1.bf16.msra.mxu0 %v488
    %1729 = vmatprep.subr.bf16.mxu0 0
    %1730 = vmatpush1.bf16.msra.mxu0 %v485
    %1731 = vmatprep.subr.bf16.mxu0 0
    %1732 = vmatpush1.bf16.msra.mxu0 %v482
    %1733 = vmatprep.subr.bf16.mxu0 0
    %1734 = vmatpush1.bf16.msra.mxu0 %v479
    %1735 = vmatprep.subr.bf16.mxu0 0
    %1736 = vmatpush1.bf16.msra.mxu0 %v476
    %1737 = vmatprep.subr.bf16.mxu0 0
    %1738 = vmatpush1.bf16.msra.mxu0 %v473
    %1739 = vmatprep.subr.bf16.mxu0 0
    %1740 = vmatpush1.bf16.msra.mxu0 %v470
    %1741 = vmatprep.subr.bf16.mxu0 0
    %1742 = vmatpush2.bf16.msra.mxu0 0
    %1743 = vmatprep.subr.bf16.mxu0 0
    %1744 = vmatpush2.bf16.msra.mxu0 0
    %1745 = vmatprep.subr.bf16.mxu0 0
    %1746 = vmatpush2.bf16.msra.mxu0 0
    %1747 = vmatprep.subr.bf16.mxu0 0
    %1748 = vmatpush2.bf16.msra.mxu0 0
    %1749 = vmatprep.subr.bf16.mxu0 0
    %1750 = vmatpush2.bf16.msra.mxu0 0
    %1751 = vmatprep.subr.bf16.mxu0 0
    %1752 = vmatpush2.bf16.msra.mxu0 0
    %1753 = vmatprep.subr.bf16.mxu0 0
    %1754 = vmatpush2.bf16.msra.mxu0 0
    %1755 = vmatprep.subr.bf16.mxu0 0
    %1756 = vmatpush2.bf16.msra.mxu0 0
    %1757 = vmatprep.mubr.bf16.mxu0 0
    %1758 = vmatmul.mubr.bf16.gmra.mxu0 %v1683
    %v1759 = vpop.f32.mrf.mxu0
    %v1760 = vadd.f32 %v384, %v1759
    %v1761 = vpop.f32.mrf.mxu0
    %v1762 = vpop.f32.mrf.mxu0
    %v1763 = vpop.f32.mrf.mxu0
    %1764 = vdwg.mxu0
    %v1765 = vadd.f32 %v1637, %v1719
    %v1766 = vmul.f32 %v1765, 0.5
    %v1767 = vtanh.pop %v1766
    %v1768 = vmul.f32 %v1767, 0.5
    %v1769 = vadd.f32 %v1768, 0.5
    %v1770 = vadd.f32 %v1639, %v1721
    %v1771 = vmul.f32 %v1770, 0.5
    %v1772 = vtanh.pop %v1771
    %v1773 = vmul.f32 %v1772, 0.5
    %v1774 = vadd.f32 %v1773, 0.5
    %v1775 = vmul.f32 %v1769, %v1760
    %v1776 = vadd.f32 %v1678, %v1775
    %v1777 = vtanh.pop %v1776
    %v1778 = vsub.f32 1.0, %v1774
    %v1779 = vmul.f32 %v1778, %v1777
    %v1780 = vmul.f32 %v1774, %v1586
    %v1781 = vadd.f32 %v1779, %v1780
    %s1782 = sadd.s32 %s76, 6
    %v1783 = vstv %s1782
    %vm1784 = vcmp.lt.s32.totalorder %v1783, %v75
    %v1785 = vsel %vm1784, 1, 0
    %1786 = vset.pattern.permute.xlu0 0
    %1787 = vperm.xlu0 %1786, %v1785
    %v1788 = vpop.permute.xlu0 %1787
    %vm1789 = vcmp.eq.s32.totalorder %v1788, 1
    %v1790 = vsel %vm1789, %v1781, 0.0
    %v1791 = vpack.c.bf16 %v1790, %v1790
    %s1792 = scalar_lea.vmem [#allocation10], 24
    %1793 = vst [vmem:[%s1792] sm:$0xf] %v1791
    %v1794 = vadd.f32 %v1599, %v1790
    %s1795 = scalar_lea.vmem [#allocation4], 28
    %v1796 = vld [vmem:[%s1795] sm:$0xf]
    %1797 = vmatprep.subr.bf16.mxu0 %v264
    %1798 = vmatpush1.bf16.msra.mxu0 %v263
    %1799 = vmatprep.subr.bf16.mxu0 %v261
    %1800 = vmatpush1.bf16.msra.mxu0 %v260
    %1801 = vmatprep.subr.bf16.mxu0 %v258
    %1802 = vmatpush1.bf16.msra.mxu0 %v257
    %1803 = vmatprep.subr.bf16.mxu0 %v255
    %1804 = vmatpush1.bf16.msra.mxu0 %v254
    %1805 = vmatprep.subr.bf16.mxu0 %v252
    %1806 = vmatpush1.bf16.msra.mxu0 %v251
    %1807 = vmatprep.subr.bf16.mxu0 %v249
    %1808 = vmatpush1.bf16.msra.mxu0 %v248
    %1809 = vmatprep.subr.bf16.mxu0 %v246
    %1810 = vmatpush1.bf16.msra.mxu0 %v245
    %1811 = vmatprep.subr.bf16.mxu0 %v243
    %1812 = vmatpush1.bf16.msra.mxu0 %v242
    %1813 = vmatprep.subr.bf16.mxu0 0
    %1814 = vmatpush2.bf16.msra.mxu0 0
    %1815 = vmatprep.subr.bf16.mxu0 0
    %1816 = vmatpush2.bf16.msra.mxu0 0
    %1817 = vmatprep.subr.bf16.mxu0 0
    %1818 = vmatpush2.bf16.msra.mxu0 0
    %1819 = vmatprep.subr.bf16.mxu0 0
    %1820 = vmatpush2.bf16.msra.mxu0 0
    %1821 = vmatprep.subr.bf16.mxu0 0
    %1822 = vmatpush2.bf16.msra.mxu0 0
    %1823 = vmatprep.subr.bf16.mxu0 0
    %1824 = vmatpush2.bf16.msra.mxu0 0
    %1825 = vmatprep.subr.bf16.mxu0 0
    %1826 = vmatpush2.bf16.msra.mxu0 0
    %1827 = vmatprep.subr.bf16.mxu0 0
    %1828 = vmatpush2.bf16.msra.mxu0 0
    %1829 = vmatprep.mubr.bf16.mxu0 0
    %1830 = vmatmul.mubr.bf16.gmra.mxu0 %v1796
    %v1831 = vpop.f32.mrf.mxu0
    %v1832 = vadd.f32 %v150, %v1831
    %v1833 = vpop.f32.mrf.mxu0
    %v1834 = vadd.f32 %v154, %v1833
    %v1835 = vpop.f32.mrf.mxu0
    %v1836 = vpop.f32.mrf.mxu0
    %1837 = vdwg.mxu0
    %1838 = vmatprep.subr.bf16.mxu0 0
    %1839 = vmatpush1.bf16.msra.mxu0 %v265
    %1840 = vmatprep.subr.bf16.mxu0 0
    %1841 = vmatpush1.bf16.msra.mxu0 %v262
    %1842 = vmatprep.subr.bf16.mxu0 0
    %1843 = vmatpush1.bf16.msra.mxu0 %v259
    %1844 = vmatprep.subr.bf16.mxu0 0
    %1845 = vmatpush1.bf16.msra.mxu0 %v256
    %1846 = vmatprep.subr.bf16.mxu0 0
    %1847 = vmatpush1.bf16.msra.mxu0 %v253
    %1848 = vmatprep.subr.bf16.mxu0 0
    %1849 = vmatpush1.bf16.msra.mxu0 %v250
    %1850 = vmatprep.subr.bf16.mxu0 0
    %1851 = vmatpush1.bf16.msra.mxu0 %v247
    %1852 = vmatprep.subr.bf16.mxu0 0
    %1853 = vmatpush1.bf16.msra.mxu0 %v244
    %1854 = vmatprep.subr.bf16.mxu0 0
    %1855 = vmatpush2.bf16.msra.mxu0 0
    %1856 = vmatprep.subr.bf16.mxu0 0
    %1857 = vmatpush2.bf16.msra.mxu0 0
    %1858 = vmatprep.subr.bf16.mxu0 0
    %1859 = vmatpush2.bf16.msra.mxu0 0
    %1860 = vmatprep.subr.bf16.mxu0 0
    %1861 = vmatpush2.bf16.msra.mxu0 0
    %1862 = vmatprep.subr.bf16.mxu0 0
    %1863 = vmatpush2.bf16.msra.mxu0 0
    %1864 = vmatprep.subr.bf16.mxu0 0
    %1865 = vmatpush2.bf16.msra.mxu0 0
    %1866 = vmatprep.subr.bf16.mxu0 0
    %1867 = vmatpush2.bf16.msra.mxu0 0
    %1868 = vmatprep.subr.bf16.mxu0 0
    %1869 = vmatpush2.bf16.msra.mxu0 0
    %1870 = vmatprep.mubr.bf16.mxu0 0
    %1871 = vmatmul.mubr.bf16.gmra.mxu0 %v1796
    %v1872 = vpop.f32.mrf.mxu0
    %v1873 = vadd.f32 %v158, %v1872
    %v1874 = vpop.f32.mrf.mxu0
    %v1875 = vpop.f32.mrf.mxu0
    %v1876 = vpop.f32.mrf.mxu0
    %1877 = vdwg.mxu0
    %v1878 = vpack.c.bf16 %v1781, %v1781
    %1879 = vmatprep.subr.bf16.mxu0 %v490
    %1880 = vmatpush1.bf16.msra.mxu0 %v489
    %1881 = vmatprep.subr.bf16.mxu0 %v487
    %1882 = vmatpush1.bf16.msra.mxu0 %v486
    %1883 = vmatprep.subr.bf16.mxu0 %v484
    %1884 = vmatpush1.bf16.msra.mxu0 %v483
    %1885 = vmatprep.subr.bf16.mxu0 %v481
    %1886 = vmatpush1.bf16.msra.mxu0 %v480
    %1887 = vmatprep.subr.bf16.mxu0 %v478
    %1888 = vmatpush1.bf16.msra.mxu0 %v477
    %1889 = vmatprep.subr.bf16.mxu0 %v475
    %1890 = vmatpush1.bf16.msra.mxu0 %v474
    %1891 = vmatprep.subr.bf16.mxu0 %v472
    %1892 = vmatpush1.bf16.msra.mxu0 %v471
    %1893 = vmatprep.subr.bf16.mxu0 %v469
    %1894 = vmatpush1.bf16.msra.mxu0 %v468
    %1895 = vmatprep.subr.bf16.mxu0 0
    %1896 = vmatpush2.bf16.msra.mxu0 0
    %1897 = vmatprep.subr.bf16.mxu0 0
    %1898 = vmatpush2.bf16.msra.mxu0 0
    %1899 = vmatprep.subr.bf16.mxu0 0
    %1900 = vmatpush2.bf16.msra.mxu0 0
    %1901 = vmatprep.subr.bf16.mxu0 0
    %1902 = vmatpush2.bf16.msra.mxu0 0
    %1903 = vmatprep.subr.bf16.mxu0 0
    %1904 = vmatpush2.bf16.msra.mxu0 0
    %1905 = vmatprep.subr.bf16.mxu0 0
    %1906 = vmatpush2.bf16.msra.mxu0 0
    %1907 = vmatprep.subr.bf16.mxu0 0
    %1908 = vmatpush2.bf16.msra.mxu0 0
    %1909 = vmatprep.subr.bf16.mxu0 0
    %1910 = vmatpush2.bf16.msra.mxu0 0
    %1911 = vmatprep.mubr.bf16.mxu0 0
    %1912 = vmatmul.mubr.bf16.gmra.mxu0 %v1878
    %v1913 = vpop.f32.mrf.mxu0
    %v1914 = vadd.f32 %v376, %v1913
    %v1915 = vpop.f32.mrf.mxu0
    %v1916 = vadd.f32 %v380, %v1915
    %v1917 = vpop.f32.mrf.mxu0
    %v1918 = vpop.f32.mrf.mxu0
    %1919 = vdwg.mxu0
    %1920 = vmatprep.subr.bf16.mxu0 0
    %1921 = vmatpush1.bf16.msra.mxu0 %v491
    %1922 = vmatprep.subr.bf16.mxu0 0
    %1923 = vmatpush1.bf16.msra.mxu0 %v488
    %1924 = vmatprep.subr.bf16.mxu0 0
    %1925 = vmatpush1.bf16.msra.mxu0 %v485
    %1926 = vmatprep.subr.bf16.mxu0 0
    %1927 = vmatpush1.bf16.msra.mxu0 %v482
    %1928 = vmatprep.subr.bf16.mxu0 0
    %1929 = vmatpush1.bf16.msra.mxu0 %v479
    %1930 = vmatprep.subr.bf16.mxu0 0
    %1931 = vmatpush1.bf16.msra.mxu0 %v476
    %1932 = vmatprep.subr.bf16.mxu0 0
    %1933 = vmatpush1.bf16.msra.mxu0 %v473
    %1934 = vmatprep.subr.bf16.mxu0 0
    %1935 = vmatpush1.bf16.msra.mxu0 %v470
    %1936 = vmatprep.subr.bf16.mxu0 0
    %1937 = vmatpush2.bf16.msra.mxu0 0
    %1938 = vmatprep.subr.bf16.mxu0 0
    %1939 = vmatpush2.bf16.msra.mxu0 0
    %1940 = vmatprep.subr.bf16.mxu0 0
    %1941 = vmatpush2.bf16.msra.mxu0 0
    %1942 = vmatprep.subr.bf16.mxu0 0
    %1943 = vmatpush2.bf16.msra.mxu0 0
    %1944 = vmatprep.subr.bf16.mxu0 0
    %1945 = vmatpush2.bf16.msra.mxu0 0
    %1946 = vmatprep.subr.bf16.mxu0 0
    %1947 = vmatpush2.bf16.msra.mxu0 0
    %1948 = vmatprep.subr.bf16.mxu0 0
    %1949 = vmatpush2.bf16.msra.mxu0 0
    %1950 = vmatprep.subr.bf16.mxu0 0
    %1951 = vmatpush2.bf16.msra.mxu0 0
    %1952 = vmatprep.mubr.bf16.mxu0 0
    %1953 = vmatmul.mubr.bf16.gmra.mxu0 %v1878
    %v1954 = vpop.f32.mrf.mxu0
    %v1955 = vadd.f32 %v384, %v1954
    %v1956 = vpop.f32.mrf.mxu0
    %v1957 = vpop.f32.mrf.mxu0
    %v1958 = vpop.f32.mrf.mxu0
    %1959 = vdwg.mxu0
    %v1960 = vadd.f32 %v1832, %v1914
    %v1961 = vmul.f32 %v1960, 0.5
    %v1962 = vtanh.pop %v1961
    %v1963 = vmul.f32 %v1962, 0.5
    %v1964 = vadd.f32 %v1963, 0.5
    %v1965 = vadd.f32 %v1834, %v1916
    %v1966 = vmul.f32 %v1965, 0.5
    %v1967 = vtanh.pop %v1966
    %v1968 = vmul.f32 %v1967, 0.5
    %v1969 = vadd.f32 %v1968, 0.5
    %v1970 = vmul.f32 %v1964, %v1955
    %v1971 = vadd.f32 %v1873, %v1970
    %v1972 = vtanh.pop %v1971
    %v1973 = vsub.f32 1.0, %v1969
    %v1974 = vmul.f32 %v1973, %v1972
    %v1975 = vmul.f32 %v1969, %v1781
    %v1976 = vadd.f32 %v1974, %v1975
    %s1977 = sadd.s32 %s76, 7
    %v1978 = vstv %s1977
    %vm1979 = vcmp.lt.s32.totalorder %v1978, %v75
    %v1980 = vsel %vm1979, 1, 0
    %1981 = vset.pattern.permute.xlu0 0
    %1982 = vperm.xlu0 %1981, %v1980
    %v1983 = vpop.permute.xlu0 %1982
    %vm1984 = vcmp.eq.s32.totalorder %v1983, 1
    %v1985 = vsel %vm1984, %v1976, 0.0
    %v1986 = vpack.c.bf16 %v1985, %v1985
    %s1987 = scalar_lea.vmem [#allocation10], 28
    %1988 = vst [vmem:[%s1987] sm:$0xf] %v1986
    %v1989 = vadd.f32 %v1794, %v1985
    %1990 = vst [vmem:[#allocation2] sm:$0xff] %v1976
    %1991 = vst [vmem:[#allocation3] sm:$0xff] %v1989
    // Predicated region
    $region42: #{tpu_custom_call.1} parent=1 // pred_check
      %p1992 = pneg %p69
    $region43: #{tpu_custom_call.1} parent=1 // pred_check_branch
      %1994 = sbr.rel (%p1992) target = $region45
    $region44: #{tpu_custom_call.1} parent=1 // pred_region
      %v1995 = vcvt.s32.f32 %v75
      %v1996 = vrcp.pop %v1995
      %1998 = vset.pattern.permute.xlu0 0
      %1999 = vperm.xlu0 %1998, %v1996
      %v2000 = vpop.permute.xlu0 %1999
      %v2002 = vmul.f32 %v1989, %v2000
      %2003 = vst [vmem:[#allocation11] sm:$0xff] %v2002
    $region45: #{tpu_custom_call.1} parent=1 // pred_fallthru
      _
    // Predicated region
    $region46: #{tpu_custom_call.1} parent=1 // pred_check
      _
    $region47: #{tpu_custom_call.1} parent=1 // pred_check_branch
      %2005 = sbr.rel (0) target = $region49
    $region48: #{tpu_custom_call.1} parent=1 // pred_region
      %s2007 = ssub.s32 512, 512
      %2008 = vsyncadd [#allocation6], %s2007
      %s2009 = sshll.u32 [#allocation10], 4
      %s2010 = int_to_ptr.vmem [resolvable:$true] %s2009
      %2015 = dma.vmem_to_hbm [thread:$0]  %s2010, 512, %s6, [#allocation6], 64, 64, 4
    $region49: #{tpu_custom_call.1} parent=1 // pred_fallthru
      _
    // Predicated region
    $region50: #{tpu_custom_call.1} parent=1 // pred_check
      _
    $region51: #{tpu_custom_call.1} parent=1 // pred_check_branch
      %2017 = sbr.rel (0) target = $region53
    $region52: #{tpu_custom_call.1} parent=1 // pred_region
      %s2019 = ssub.s32 128, 128
      %2020 = vsyncadd [#allocation12], %s2019
      %s2022 = sshll.u32 [#allocation11], 4
      %s2023 = int_to_ptr.vmem [resolvable:$true] %s2022
      %2025 = dma.vmem_to_hbm [thread:$0]  %s2023, 128, %s7, [#allocation12]
    $region53: #{tpu_custom_call.1} parent=1 // pred_fallthru
      _
    // Predicated region
    $region54: #{tpu_custom_call.1} parent=1 // pred_check
      _
    $region55: #{tpu_custom_call.1} parent=1 // pred_check_branch
      %2027 = sbr.rel (0) target = $region57
    $region56: #{tpu_custom_call.1} parent=1 // pred_region
      %2028 = dma.done [#allocation6], 512
    $region57: #{tpu_custom_call.1} parent=1 // pred_fallthru
      _
    // Predicated region
    $region58: #{tpu_custom_call.1} parent=1 // pred_check
      _
    $region59: #{tpu_custom_call.1} parent=1 // pred_check_branch
      %2030 = sbr.rel (0) target = $region61
    $region60: #{tpu_custom_call.1} parent=1 // pred_region
      %2031 = dma.done [#allocation12], 128
    $region61: #{tpu_custom_call.1} parent=1 // pred_fallthru
      _
    %2032 = vsyncpa [#allocation5], 1
    %2033 = vsyncpa [#allocation8], 1
    %2034 = vsyncpa [#allocation6], 1
    %2035 = vsyncpa [#allocation12], 1

</llo_original>
